<compile_context>
chip_gen: v7x
topology: tpu7x:2x2x1
jax: 0.10.0
libtpu: 0.0.40
codegen_flags: <defaults>
</compile_context>

<pallas_src>
import functools

import jax
import jax.numpy as jnp
from jax import lax
from jax.experimental import pallas as pl
from jax.experimental.pallas import tpu as pltpu


# ----------------------------------------------------------------------------
# Kernel
# ----------------------------------------------------------------------------
def mha_kernel(x_ref, wqkv_ref, bqkv_ref, wo_ref, bo_ref,
               out_ref, attn_ref, q_s, k_s, v_s, *,
               compute_dtype, approx_recip):
    Bb, S, D = x_ref.shape
    H, _, hd = wo_ref.shape
    Tq = out_ref.shape[1]
    fuse_all_heads = (wqkv_ref.ndim == 2)     # (3*D, D) fully fused vs (H, 3*hd, D)
    cd = compute_dtype
    qi = pl.program_id(1)

    # Contract last dim of both operands == x @ W.T, no in-kernel transposes.
    dn = (((1,), (1,)), ((), ()))

    # ---- QKV projection: once per batch block; cached in head-major VMEM scratch.
    @pl.when(qi == 0)
    def _():
        x2 = x_ref[...].reshape(Bb * S, D).astype(cd)
        if fuse_all_heads:
            # One lane-dense matmul with N = 3*D (scale/bias folded host-side).
            r = lax.dot_general(x2, wqkv_ref[...], dn,
                                preferred_element_type=jnp.float32)
            r = r + bqkv_ref[...]
            for h in range(H):                # static, tile-aligned lane slices
                o = h * hd
                q_s[h] = r[:, o:o + hd].reshape(Bb, S, hd).astype(cd)
                k_s[h] = r[:, D + o:D + o + hd].reshape(Bb, S, hd).astype(cd)
                v_s[h] = r[:, 2 * D + o:2 * D + o + hd].reshape(Bb, S, hd).astype(cd)
        else:
            # Per-head fused QKV (N = 3*hd): one dot per head instead of three.
            def proj(h, carry):
                r = lax.dot_general(x2, wqkv_ref[h], dn,
                                    preferred_element_type=jnp.float32)
                r = r + bqkv_ref[h]
                q_s[h] = r[:, 0:hd].reshape(Bb, S, hd).astype(cd)
                k_s[h] = r[:, hd:2 * hd].reshape(Bb, S, hd).astype(cd)
                v_s[h] = r[:, 2 * hd:3 * hd].reshape(Bb, S, hd).astype(cd)
                return carry
            lax.fori_loop(0, H, proj, 0, unroll=(H <= 8))

    # ---- Attention for this query tile, one head at a time.
    q0 = pl.multiple_of(qi * Tq, Tq)
    acc0 = jnp.zeros((Bb * Tq, D), jnp.float32)    # fc_out accumulator over heads

    def head_body(h, acc):
        q = q_s[h, :, pl.ds(q0, Tq), :]            # (Bb, Tq, hd)
        k = k_s[h]                                 # (Bb, S, hd)
        v = v_s[h]
        s = jnp.einsum('bqd,bkd->bqk', q, k,
                       preferred_element_type=jnp.float32)          # (Bb, Tq, S)
        m = jnp.max(s, axis=-1, keepdims=True)
        p = jnp.exp(s - m)
        inv = pl.reciprocal(jnp.sum(p, axis=-1, keepdims=True), approx=approx_recip)
        a = p * inv                                                  # softmax, f32
        # Per-head, lane-dense store of this query tile's attention weights.
        attn_ref[:, pl.ds(h, 1), :, :] = a[:, None, :, :].astype(attn_ref.dtype)
        ws = jnp.einsum('bqk,bkd->bqd', a.astype(cd), v,
                        preferred_element_type=jnp.float32)          # (Bb, Tq, hd)
        # fc_out as per-head partial matmul, accumulated in f32.
        return acc + lax.dot_general(ws.reshape(Bb * Tq, hd).astype(cd),
                                     wo_ref[h], dn,
                                     preferred_element_type=jnp.float32)

    acc = lax.fori_loop(0, H, head_body, acc0, unroll=(H <= 4))
    out_ref[...] = (acc + bo_ref[...]).reshape(Bb, Tq, D).astype(out_ref.dtype)


# ----------------------------------------------------------------------------
# Host-side tiling / VMEM budgeting
# ----------------------------------------------------------------------------
def _round_up(x, m):
    return -(-x // m) * m


def _padded_size(shape):
    """Element count after (sublane=8, lane=128) padding of the last two dims."""
    dims = list(shape)
    if len(dims) >= 1:
        dims[-1] = _round_up(dims[-1], 128)
    if len(dims) >= 2:
        dims[-2] = _round_up(dims[-2], 8)
    n = 1
    for d in dims:
        n *= d
    return n


def _vmem_limit_bytes():
    cap = None
    try:
        info = pltpu.get_tpu_info()
        cap = getattr(info, "vmem_capacity_bytes", None)
    except Exception:
        cap = None
    if not cap or cap <= 0:
        cap = 64 * 1024 * 1024          # conservative fallback (v7x per-core VMEM)
    # ~102 MiB on 128 MiB chips (v5e/v6e), ~51 MiB on 64 MiB chips (v7x).
    return min(int(cap * 0.8), 120 * 1024 * 1024)


def _select_tiles(B, S, D, H, x_bytes, cd_bytes, out_bytes, attn_bytes,
                  fuse_all, vmem_limit, q_tile=None):
    """Pick (batch block Bb, query tile Tq) from a VMEM budget."""
    hd = D // H
    budget = int(vmem_limit * 0.75)

    def estimate(bb, tq):
        n = 0
        n += 2 * _padded_size((bb, H, tq, S)) * attn_bytes        # attn out block (x2 buf)
        n += 2 * _padded_size((bb, tq, D)) * out_bytes            # out block
        n += 2 * _padded_size((bb, S, D)) * x_bytes               # x in block
        n += 3 * _padded_size((H, bb, S, hd)) * cd_bytes          # Q/K/V scratch
        wshape = (3 * D, D) if fuse_all else (H, 3 * hd, D)
        n += 2 * _padded_size(wshape) * cd_bytes                  # fused QKV weight
        n += 2 * _padded_size((H, D, hd)) * cd_bytes              # fc_out weight
        # f32 in-kernel temporaries (scores/probs, accumulator, projection slab).
        n += 3 * _padded_size((bb, tq, S)) * 4
        n += _padded_size((bb * tq, D)) * 4
        n += _padded_size((bb * S, (3 * D) if fuse_all else (3 * hd))) * 4
        return n

    def divisors_desc(n):
        return [d for d in range(n, 0, -1) if n % d == 0]

    # Keep >= 2 batch blocks whenever B >= 2 so v7x's 2 TensorCores (fed by the
    # "parallel" batch axis) are both busy; negligible cost on 1-TC chips.
    bb_cands = [bb for bb in divisors_desc(B) if B // bb >= min(2, B)]
    if q_tile is not None:
        tq_cands = [q_tile]
    else:
        tq_cands = [t for t in divisors_desc(S) if t == S or t % 8 == 0]
        if not tq_cands:
            tq_cands = [S]

    best = None
    for bb in bb_cands:
        for tq in tq_cands:
            if estimate(bb, tq) <= budget:
                key = (bb * tq, tq)       # maximize per-step rows (MXU M), then Tq
                if best is None or key > best[0]:
                    best = (key, bb, tq)
    if best is not None:
        return best[1], best[2]
    # Nothing fits the budget: best-effort smallest tiles.
    return bb_cands[-1], tq_cands[-1]


def _const_index_map(ndim):
    def index_map(b, q):
        return (0,) * ndim
    return index_map


# ----------------------------------------------------------------------------
# Public wrapper
# ----------------------------------------------------------------------------
def mha_forward(x, params, num_heads, *, compute_dtype=jnp.float32,
                attn_dtype=None, q_tile=None):
    B, S, D = x.shape
    H = num_heads
    assert D % H == 0, "input_dim must be divisible by num_heads"
    hd = D // H
    wq, bq, wk, bk, wv, bv, wo, bo = params
    cd = compute_dtype
    # NOTE: pass attn_dtype=jnp.bfloat16 to halve the (B,H,S,S) writeback bytes
    # (softmax stays f32 in-kernel); default keeps the module's dtype semantics.
    attn_dtype = x.dtype if attn_dtype is None else attn_dtype

    scale = 1.0 / (float(D) ** 0.5)   # reference divides scores by sqrt(input_dim)

    # One-time host-side weight re-layouts: fused QKV (scale folded into Q) and
    # per-head fc_out weight (no in-kernel transposes, no lane concatenate).
    fuse_all = (hd % 128 == 0)
    wq_s = wq * scale
    bq_s = bq * scale
    if fuse_all:
        w_qkv = jnp.concatenate([wq_s, wk, wv], axis=0).astype(cd)           # (3D, D)
        b_qkv = jnp.concatenate([bq_s, bk, bv], axis=0).reshape(1, 3 * D)
        b_qkv = b_qkv.astype(jnp.float32)
    else:
        w_qkv = jnp.concatenate(
            [wq_s.reshape(H, hd, D), wk.reshape(H, hd, D), wv.reshape(H, hd, D)],
            axis=1).astype(cd)                                               # (H, 3hd, D)
        b_qkv = jnp.concatenate(
            [bq_s.reshape(H, 1, hd), bk.reshape(H, 1, hd), bv.reshape(H, 1, hd)],
            axis=2).astype(jnp.float32)                                      # (H, 1, 3hd)
    wo_h = wo.reshape(D, H, hd).transpose(1, 0, 2).astype(cd)                # (H, D, hd)
    bo_2 = bo.reshape(1, D).astype(jnp.float32)

    if q_tile is not None:
        assert S % q_tile == 0 and (q_tile == S or q_tile % 8 == 0)

    vmem_limit = _vmem_limit_bytes()
    itemsize = lambda dt: jnp.dtype(dt).itemsize
    Bb, Tq = _select_tiles(B, S, D, H,
                           itemsize(x.dtype), itemsize(cd),
                           itemsize(x.dtype), itemsize(attn_dtype),
                           fuse_all, vmem_limit, q_tile=q_tile)
    grid = (B // Bb, S // Tq)

    # Weight/bias blocks have constant index maps, so they are DMA'd only once.
    # (Single-buffering them via pl.Buffered(1) would save a further 4*D*D*cd
    #  bytes of VMEM; left out here to keep the compile path conservative.)
    in_specs = [
        pl.BlockSpec((Bb, S, D), lambda b, q: (b, 0, 0)),      # x (fetched once per b)
        pl.BlockSpec(w_qkv.shape, _const_index_map(w_qkv.ndim)),
        pl.BlockSpec(b_qkv.shape, _const_index_map(b_qkv.ndim)),
        pl.BlockSpec(wo_h.shape, _const_index_map(3)),
        pl.BlockSpec(bo_2.shape, _const_index_map(2)),
    ]
    out_specs = (
        pl.BlockSpec((Bb, Tq, D), lambda b, q: (b, q, 0)),
        pl.BlockSpec((Bb, H, Tq, S), lambda b, q: (b, 0, q, 0)),
    )
    scratch_shapes = [
        pltpu.VMEM((H, Bb, S, hd), cd),   # Q (scale pre-folded)
        pltpu.VMEM((H, Bb, S, hd), cd),   # K
        pltpu.VMEM((H, Bb, S, hd), cd),   # V
    ]

    kernel = functools.partial(mha_kernel, compute_dtype=cd,
                               approx_recip=(cd != jnp.float32))

    out, attn = pl.pallas_call(
        kernel,
        out_shape=(
            jax.ShapeDtypeStruct((B, S, D), x.dtype),
            jax.ShapeDtypeStruct((B, H, S, S), attn_dtype),
        ),
        grid=grid,
        in_specs=in_specs,
        out_specs=out_specs,
        scratch_shapes=scratch_shapes,
        compiler_params=pltpu.CompilerParams(
            dimension_semantics=("parallel", "arbitrary"),
            vmem_limit_bytes=vmem_limit),
    )(x, w_qkv, b_qkv, wo_h, bo_2)
    return out, attn


# ----------------------------------------------------------------------------
# Pure-JAX reference (mirrors the PyTorch module) and self-test
# ----------------------------------------------------------------------------
def reference_mha(x, params, num_heads):
    B, S, D = x.shape
    hd = D // num_heads
    wq, bq, wk, bk, wv, bv, wo, bo = params
    Q = x @ wq.T + bq
    K = x @ wk.T + bk
    V = x @ wv.T + bv
    Q = Q.reshape(B, S, num_heads, hd).transpose(0, 2, 1, 3)
    K = K.reshape(B, S, num_heads, hd).transpose(0, 2, 1, 3)
    V = V.reshape(B, S, num_heads, hd).transpose(0, 2, 1, 3)
    scores = jnp.einsum("bhqd,bhkd->bhqk", Q, K) / (D ** 0.5)
    attn = jax.nn.softmax(scores, axis=-1)
    ws = jnp.einsum("bhqk,bhkd->bhqd", attn, V)
    ws = ws.transpose(0, 2, 1, 3).reshape(B, S, D)
    out = ws @ wo.T + bo
    return out, attn


def _make_inputs(key, B, S, D):
    keys = jax.random.split(key, 9)
    bound = 1.0 / (D ** 0.5)   # PyTorch nn.Linear default init range

    def lin(kw, kb):
        w = jax.random.uniform(kw, (D, D), jnp.float32, -bound, bound)
        b = jax.random.uniform(kb, (D,), jnp.float32, -bound, bound)
        return w, b

    wq, bq = lin(keys[0], keys[1])
    wk, bk = lin(keys[2], keys[3])
    wv, bv = lin(keys[4], keys[5])
    wo, bo = lin(keys[6], keys[7])
    x = jax.random.normal(keys[8], (B, S, D), jnp.float32)
    return x, (wq, bq, wk, bk, wv, bv, wo, bo)


if __name__ == "__main__":
    root = jax.random.PRNGKey(0)
    key_a, key_b = jax.random.split(root)

    # 1) f32, hd < 128 (per-head fused QKV path), single query tile.
    x, params = _make_inputs(key_a, 2, 8, 32)
    ref_out, ref_attn = reference_mha(x, params, 4)
    out, attn = mha_forward(x, params, 4)
    out = jax.block_until_ready(out)
    attn = jax.block_until_ready(attn)
    assert jnp.allclose(out, ref_out, atol=1e-5, rtol=1e-5)
    assert jnp.allclose(attn, ref_attn, atol=1e-5, rtol=1e-5)

    # 2) bf16 MXU operands (beneficial on v5e as well as v6e/v7x): f32 accumulation,
    #    f32 softmax, approximate EUP reciprocal on this reduced-precision path.
    out_bf, attn_bf = mha_forward(x, params, 4, compute_dtype=jnp.bfloat16)
    out_bf = jax.block_until_ready(out_bf)
    attn_bf = jax.block_until_ready(attn_bf)
    assert jnp.allclose(out_bf, ref_out, atol=5e-2, rtol=5e-2)
    assert jnp.allclose(attn_bf, ref_attn, atol=5e-2, rtol=5e-2)

    # 3) f32, hd == 128 (single fully fused QKV dot) with forced query tiling
    #    (exercises the multi-q-tile grid axis and the Q/K/V scratch reuse).
    x3, params3 = _make_inputs(key_b, 2, 16, 256)
    ref_out3, ref_attn3 = reference_mha(x3, params3, 2)
    out3, attn3 = mha_forward(x3, params3, 2, q_tile=8)
    out3 = jax.block_until_ready(out3)
    attn3 = jax.block_until_ready(attn3)
    assert jnp.allclose(out3, ref_out3, atol=1e-3, rtol=1e-3)
    assert jnp.allclose(attn3, ref_attn3, atol=1e-3, rtol=1e-3)

    print("KERNEL_OK")
</pallas_src>

<mosaic_0001>
module attributes {stable_mosaic.version = 11 : i64} {
  func.func @mha_kernel(%arg0: i32, %arg1: i32, %arg2: memref<1x8x32xf32, #tpu.memory_space<vmem>>, %arg3: memref<4x24x32xf32, #tpu.memory_space<vmem>>, %arg4: memref<4x1x24xf32, #tpu.memory_space<vmem>>, %arg5: memref<4x32x8xf32, #tpu.memory_space<vmem>>, %arg6: memref<1x32xf32, #tpu.memory_space<vmem>>, %arg7: memref<1x8x32xf32, #tpu.memory_space<vmem>>, %arg8: memref<1x4x8x8xf32, #tpu.memory_space<vmem>>, %arg9: memref<4x1x8x8xf32, #tpu.memory_space<vmem>>, %arg10: memref<4x1x8x8xf32, #tpu.memory_space<vmem>>, %arg11: memref<4x1x8x8xf32, #tpu.memory_space<vmem>>) attributes {dimension_semantics = [#tpu.dimension_semantics<parallel>, #tpu.dimension_semantics<arbitrary>], iteration_bounds = array<i64: 2, 1>, scalar_prefetch = 0 : i64, scratch_operands = 3 : i64, tpu.core_type = #tpu.core_type<tc>, window_params = [{transform_indices = @transform_0, window_bounds = array<i64: 1, 8, 32>}, {pipeline_mode = #tpu.pipeline_mode<synchronous>, transform_indices = @transform_1, window_bounds = array<i64: 4, 24, 32>}, {pipeline_mode = #tpu.pipeline_mode<synchronous>, transform_indices = @transform_2, window_bounds = array<i64: 4, 1, 24>}, {pipeline_mode = #tpu.pipeline_mode<synchronous>, transform_indices = @transform_3, window_bounds = array<i64: 4, 32, 8>}, {pipeline_mode = #tpu.pipeline_mode<synchronous>, transform_indices = @transform_4, window_bounds = array<i64: 1, 32>}, {transform_indices = @transform_5, window_bounds = array<i64: 1, 8, 32>}, {transform_indices = @transform_6, window_bounds = array<i64: 1, 4, 8, 8>}]} {
    %c0_i32 = arith.constant 0 : i32
    %0 = arith.cmpi eq, %arg1, %c0_i32 : i32
    %1 = arith.extui %0 : i1 to i32
    %c0_i32_0 = arith.constant 0 : i32
    %2 = arith.cmpi ne, %1, %c0_i32_0 : i32
    scf.if %2 {
      %c0_78 = arith.constant 0 : index
      %c0_79 = arith.constant 0 : index
      %c0_80 = arith.constant 0 : index
      %135 = vector.load %arg2[%c0_78, %c0_79, %c0_80] : memref<1x8x32xf32, #tpu.memory_space<vmem>>, vector<1x8x32xf32>
      %136 = vector.shape_cast %135 : vector<1x8x32xf32> to vector<8x32xf32>
      %c0_i32_81 = arith.constant 0 : i32
      %137 = arith.index_cast %c0_i32_81 : i32 to index
      %c0_82 = arith.constant 0 : index
      %c0_83 = arith.constant 0 : index
      %138 = vector.load %arg3[%137, %c0_82, %c0_83] : memref<4x24x32xf32, #tpu.memory_space<vmem>>, vector<1x24x32xf32>
      %139 = vector.shape_cast %138 : vector<1x24x32xf32> to vector<24x32xf32>
      %cst_84 = arith.constant dense<0.000000e+00> : vector<8x24xf32>
      %140 = tpu.matmul %136, %139, %cst_84 {dimension_numbers = #tpu.dot_dimension_numbers<[1], [1], [0], [0], [0, 0, 1, 0], [], []>} : vector<8x32xf32>, vector<24x32xf32>, vector<8x24xf32> -> vector<8x24xf32>
      %141 = arith.index_cast %c0_i32_81 : i32 to index
      %c0_85 = arith.constant 0 : index
      %c0_86 = arith.constant 0 : index
      %142 = vector.load %arg4[%141, %c0_85, %c0_86] : memref<4x1x24xf32, #tpu.memory_space<vmem>>, vector<1x1x24xf32>
      %143 = vector.shape_cast %142 : vector<1x1x24xf32> to vector<1x24xf32>
      %144 = vector.broadcast %143 : vector<1x24xf32> to vector<8x24xf32>
      %145 = arith.addf %140, %144 : vector<8x24xf32>
      %146 = vector.extract_strided_slice %145 {offsets = [0, 0], sizes = [8, 8], strides = [1, 1]} : vector<8x24xf32> to vector<8x8xf32>
      %147 = vector.shape_cast %146 : vector<8x8xf32> to vector<1x8x8xf32>
      %148 = arith.index_cast %c0_i32_81 : i32 to index
      %c0_87 = arith.constant 0 : index
      %c0_88 = arith.constant 0 : index
      %c0_89 = arith.constant 0 : index
      %149 = vector.load %arg9[%148, %c0_87, %c0_88, %c0_89] : memref<4x1x8x8xf32, #tpu.memory_space<vmem>>, vector<1x1x8x8xf32>
      %150 = vector.shape_cast %149 : vector<1x1x8x8xf32> to vector<1x8x8xf32>
      %151 = vector.shape_cast %147 : vector<1x8x8xf32> to vector<1x1x8x8xf32>
      tpu.vector_store %arg9[%148, %c0_87, %c0_88, %c0_89], %151 {strides = array<i32>} : memref<4x1x8x8xf32, #tpu.memory_space<vmem>>, vector<1x1x8x8xf32>,
      %152 = vector.extract_strided_slice %145 {offsets = [0, 8], sizes = [8, 8], strides = [1, 1]} : vector<8x24xf32> to vector<8x8xf32>
      %153 = vector.shape_cast %152 : vector<8x8xf32> to vector<1x8x8xf32>
      %154 = arith.index_cast %c0_i32_81 : i32 to index
      %c0_90 = arith.constant 0 : index
      %c0_91 = arith.constant 0 : index
      %c0_92 = arith.constant 0 : index
      %155 = vector.load %arg10[%154, %c0_90, %c0_91, %c0_92] : memref<4x1x8x8xf32, #tpu.memory_space<vmem>>, vector<1x1x8x8xf32>
      %156 = vector.shape_cast %155 : vector<1x1x8x8xf32> to vector<1x8x8xf32>
      %157 = vector.shape_cast %153 : vector<1x8x8xf32> to vector<1x1x8x8xf32>
      tpu.vector_store %arg10[%154, %c0_90, %c0_91, %c0_92], %157 {strides = array<i32>} : memref<4x1x8x8xf32, #tpu.memory_space<vmem>>, vector<1x1x8x8xf32>,
      %158 = vector.extract_strided_slice %145 {offsets = [0, 16], sizes = [8, 8], strides = [1, 1]} : vector<8x24xf32> to vector<8x8xf32>
      %159 = vector.shape_cast %158 : vector<8x8xf32> to vector<1x8x8xf32>
      %160 = arith.index_cast %c0_i32_81 : i32 to index
      %c0_93 = arith.constant 0 : index
      %c0_94 = arith.constant 0 : index
      %c0_95 = arith.constant 0 : index
      %161 = vector.load %arg11[%160, %c0_93, %c0_94, %c0_95] : memref<4x1x8x8xf32, #tpu.memory_space<vmem>>, vector<1x1x8x8xf32>
      %162 = vector.shape_cast %161 : vector<1x1x8x8xf32> to vector<1x8x8xf32>
      %163 = vector.shape_cast %159 : vector<1x8x8xf32> to vector<1x1x8x8xf32>
      tpu.vector_store %arg11[%160, %c0_93, %c0_94, %c0_95], %163 {strides = array<i32>} : memref<4x1x8x8xf32, #tpu.memory_space<vmem>>, vector<1x1x8x8xf32>,
      %c1_i32_96 = arith.constant 1 : i32
      %164 = arith.index_cast %c1_i32_96 : i32 to index
      %c0_97 = arith.constant 0 : index
      %c0_98 = arith.constant 0 : index
      %165 = vector.load %arg3[%164, %c0_97, %c0_98] : memref<4x24x32xf32, #tpu.memory_space<vmem>>, vector<1x24x32xf32>
      %166 = vector.shape_cast %165 : vector<1x24x32xf32> to vector<24x32xf32>
      %cst_99 = arith.constant dense<0.000000e+00> : vector<8x24xf32>
      %167 = tpu.matmul %136, %166, %cst_99 {dimension_numbers = #tpu.dot_dimension_numbers<[1], [1], [0], [0], [0, 0, 1, 0], [], []>} : vector<8x32xf32>, vector<24x32xf32>, vector<8x24xf32> -> vector<8x24xf32>
      %168 = arith.index_cast %c1_i32_96 : i32 to index
      %c0_100 = arith.constant 0 : index
      %c0_101 = arith.constant 0 : index
      %169 = vector.load %arg4[%168, %c0_100, %c0_101] : memref<4x1x24xf32, #tpu.memory_space<vmem>>, vector<1x1x24xf32>
      %170 = vector.shape_cast %169 : vector<1x1x24xf32> to vector<1x24xf32>
      %171 = vector.broadcast %170 : vector<1x24xf32> to vector<8x24xf32>
      %172 = arith.addf %167, %171 : vector<8x24xf32>
      %173 = vector.extract_strided_slice %172 {offsets = [0, 0], sizes = [8, 8], strides = [1, 1]} : vector<8x24xf32> to vector<8x8xf32>
      %174 = vector.shape_cast %173 : vector<8x8xf32> to vector<1x8x8xf32>
      %175 = arith.index_cast %c1_i32_96 : i32 to index
      %c0_102 = arith.constant 0 : index
      %c0_103 = arith.constant 0 : index
      %c0_104 = arith.constant 0 : index
      %176 = vector.load %arg9[%175, %c0_102, %c0_103, %c0_104] : memref<4x1x8x8xf32, #tpu.memory_space<vmem>>, vector<1x1x8x8xf32>
      %177 = vector.shape_cast %176 : vector<1x1x8x8xf32> to vector<1x8x8xf32>
      %178 = vector.shape_cast %174 : vector<1x8x8xf32> to vector<1x1x8x8xf32>
      tpu.vector_store %arg9[%175, %c0_102, %c0_103, %c0_104], %178 {strides = array<i32>} : memref<4x1x8x8xf32, #tpu.memory_space<vmem>>, vector<1x1x8x8xf32>,
      %179 = vector.extract_strided_slice %172 {offsets = [0, 8], sizes = [8, 8], strides = [1, 1]} : vector<8x24xf32> to vector<8x8xf32>
      %180 = vector.shape_cast %179 : vector<8x8xf32> to vector<1x8x8xf32>
      %181 = arith.index_cast %c1_i32_96 : i32 to index
      %c0_105 = arith.constant 0 : index
      %c0_106 = arith.constant 0 : index
      %c0_107 = arith.constant 0 : index
      %182 = vector.load %arg10[%181, %c0_105, %c0_106, %c0_107] : memref<4x1x8x8xf32, #tpu.memory_space<vmem>>, vector<1x1x8x8xf32>
      %183 = vector.shape_cast %182 : vector<1x1x8x8xf32> to vector<1x8x8xf32>
      %184 = vector.shape_cast %180 : vector<1x8x8xf32> to vector<1x1x8x8xf32>
      tpu.vector_store %arg10[%181, %c0_105, %c0_106, %c0_107], %184 {strides = array<i32>} : memref<4x1x8x8xf32, #tpu.memory_space<vmem>>, vector<1x1x8x8xf32>,
      %185 = vector.extract_strided_slice %172 {offsets = [0, 16], sizes = [8, 8], strides = [1, 1]} : vector<8x24xf32> to vector<8x8xf32>
      %186 = vector.shape_cast %185 : vector<8x8xf32> to vector<1x8x8xf32>
      %187 = arith.index_cast %c1_i32_96 : i32 to index
      %c0_108 = arith.constant 0 : index
      %c0_109 = arith.constant 0 : index
      %c0_110 = arith.constant 0 : index
      %188 = vector.load %arg11[%187, %c0_108, %c0_109, %c0_110] : memref<4x1x8x8xf32, #tpu.memory_space<vmem>>, vector<1x1x8x8xf32>
      %189 = vector.shape_cast %188 : vector<1x1x8x8xf32> to vector<1x8x8xf32>
      %190 = vector.shape_cast %186 : vector<1x8x8xf32> to vector<1x1x8x8xf32>
      tpu.vector_store %arg11[%187, %c0_108, %c0_109, %c0_110], %190 {strides = array<i32>} : memref<4x1x8x8xf32, #tpu.memory_space<vmem>>, vector<1x1x8x8xf32>,
      %c2_i32_111 = arith.constant 2 : i32
      %191 = arith.index_cast %c2_i32_111 : i32 to index
      %c0_112 = arith.constant 0 : index
      %c0_113 = arith.constant 0 : index
      %192 = vector.load %arg3[%191, %c0_112, %c0_113] : memref<4x24x32xf32, #tpu.memory_space<vmem>>, vector<1x24x32xf32>
      %193 = vector.shape_cast %192 : vector<1x24x32xf32> to vector<24x32xf32>
      %cst_114 = arith.constant dense<0.000000e+00> : vector<8x24xf32>
      %194 = tpu.matmul %136, %193, %cst_114 {dimension_numbers = #tpu.dot_dimension_numbers<[1], [1], [0], [0], [0, 0, 1, 0], [], []>} : vector<8x32xf32>, vector<24x32xf32>, vector<8x24xf32> -> vector<8x24xf32>
      %195 = arith.index_cast %c2_i32_111 : i32 to index
      %c0_115 = arith.constant 0 : index
      %c0_116 = arith.constant 0 : index
      %196 = vector.load %arg4[%195, %c0_115, %c0_116] : memref<4x1x24xf32, #tpu.memory_space<vmem>>, vector<1x1x24xf32>
      %197 = vector.shape_cast %196 : vector<1x1x24xf32> to vector<1x24xf32>
      %198 = vector.broadcast %197 : vector<1x24xf32> to vector<8x24xf32>
      %199 = arith.addf %194, %198 : vector<8x24xf32>
      %200 = vector.extract_strided_slice %199 {offsets = [0, 0], sizes = [8, 8], strides = [1, 1]} : vector<8x24xf32> to vector<8x8xf32>
      %201 = vector.shape_cast %200 : vector<8x8xf32> to vector<1x8x8xf32>
      %202 = arith.index_cast %c2_i32_111 : i32 to index
      %c0_117 = arith.constant 0 : index
      %c0_118 = arith.constant 0 : index
      %c0_119 = arith.constant 0 : index
      %203 = vector.load %arg9[%202, %c0_117, %c0_118, %c0_119] : memref<4x1x8x8xf32, #tpu.memory_space<vmem>>, vector<1x1x8x8xf32>
      %204 = vector.shape_cast %203 : vector<1x1x8x8xf32> to vector<1x8x8xf32>
      %205 = vector.shape_cast %201 : vector<1x8x8xf32> to vector<1x1x8x8xf32>
      tpu.vector_store %arg9[%202, %c0_117, %c0_118, %c0_119], %205 {strides = array<i32>} : memref<4x1x8x8xf32, #tpu.memory_space<vmem>>, vector<1x1x8x8xf32>,
      %206 = vector.extract_strided_slice %199 {offsets = [0, 8], sizes = [8, 8], strides = [1, 1]} : vector<8x24xf32> to vector<8x8xf32>
      %207 = vector.shape_cast %206 : vector<8x8xf32> to vector<1x8x8xf32>
      %208 = arith.index_cast %c2_i32_111 : i32 to index
      %c0_120 = arith.constant 0 : index
      %c0_121 = arith.constant 0 : index
      %c0_122 = arith.constant 0 : index
      %209 = vector.load %arg10[%208, %c0_120, %c0_121, %c0_122] : memref<4x1x8x8xf32, #tpu.memory_space<vmem>>, vector<1x1x8x8xf32>
      %210 = vector.shape_cast %209 : vector<1x1x8x8xf32> to vector<1x8x8xf32>
      %211 = vector.shape_cast %207 : vector<1x8x8xf32> to vector<1x1x8x8xf32>
      tpu.vector_store %arg10[%208, %c0_120, %c0_121, %c0_122], %211 {strides = array<i32>} : memref<4x1x8x8xf32, #tpu.memory_space<vmem>>, vector<1x1x8x8xf32>,
      %212 = vector.extract_strided_slice %199 {offsets = [0, 16], sizes = [8, 8], strides = [1, 1]} : vector<8x24xf32> to vector<8x8xf32>
      %213 = vector.shape_cast %212 : vector<8x8xf32> to vector<1x8x8xf32>
      %214 = arith.index_cast %c2_i32_111 : i32 to index
      %c0_123 = arith.constant 0 : index
      %c0_124 = arith.constant 0 : index
      %c0_125 = arith.constant 0 : index
      %215 = vector.load %arg11[%214, %c0_123, %c0_124, %c0_125] : memref<4x1x8x8xf32, #tpu.memory_space<vmem>>, vector<1x1x8x8xf32>
      %216 = vector.shape_cast %215 : vector<1x1x8x8xf32> to vector<1x8x8xf32>
      %217 = vector.shape_cast %213 : vector<1x8x8xf32> to vector<1x1x8x8xf32>
      tpu.vector_store %arg11[%214, %c0_123, %c0_124, %c0_125], %217 {strides = array<i32>} : memref<4x1x8x8xf32, #tpu.memory_space<vmem>>, vector<1x1x8x8xf32>,
      %c3_i32_126 = arith.constant 3 : i32
      %218 = arith.index_cast %c3_i32_126 : i32 to index
      %c0_127 = arith.constant 0 : index
      %c0_128 = arith.constant 0 : index
      %219 = vector.load %arg3[%218, %c0_127, %c0_128] : memref<4x24x32xf32, #tpu.memory_space<vmem>>, vector<1x24x32xf32>
      %220 = vector.shape_cast %219 : vector<1x24x32xf32> to vector<24x32xf32>
      %cst_129 = arith.constant dense<0.000000e+00> : vector<8x24xf32>
      %221 = tpu.matmul %136, %220, %cst_129 {dimension_numbers = #tpu.dot_dimension_numbers<[1], [1], [0], [0], [0, 0, 1, 0], [], []>} : vector<8x32xf32>, vector<24x32xf32>, vector<8x24xf32> -> vector<8x24xf32>
      %222 = arith.index_cast %c3_i32_126 : i32 to index
      %c0_130 = arith.constant 0 : index
      %c0_131 = arith.constant 0 : index
      %223 = vector.load %arg4[%222, %c0_130, %c0_131] : memref<4x1x24xf32, #tpu.memory_space<vmem>>, vector<1x1x24xf32>
      %224 = vector.shape_cast %223 : vector<1x1x24xf32> to vector<1x24xf32>
      %225 = vector.broadcast %224 : vector<1x24xf32> to vector<8x24xf32>
      %226 = arith.addf %221, %225 : vector<8x24xf32>
      %227 = vector.extract_strided_slice %226 {offsets = [0, 0], sizes = [8, 8], strides = [1, 1]} : vector<8x24xf32> to vector<8x8xf32>
      %228 = vector.shape_cast %227 : vector<8x8xf32> to vector<1x8x8xf32>
      %229 = arith.index_cast %c3_i32_126 : i32 to index
      %c0_132 = arith.constant 0 : index
      %c0_133 = arith.constant 0 : index
      %c0_134 = arith.constant 0 : index
      %230 = vector.load %arg9[%229, %c0_132, %c0_133, %c0_134] : memref<4x1x8x8xf32, #tpu.memory_space<vmem>>, vector<1x1x8x8xf32>
      %231 = vector.shape_cast %230 : vector<1x1x8x8xf32> to vector<1x8x8xf32>
      %232 = vector.shape_cast %228 : vector<1x8x8xf32> to vector<1x1x8x8xf32>
      tpu.vector_store %arg9[%229, %c0_132, %c0_133, %c0_134], %232 {strides = array<i32>} : memref<4x1x8x8xf32, #tpu.memory_space<vmem>>, vector<1x1x8x8xf32>,
      %233 = vector.extract_strided_slice %226 {offsets = [0, 8], sizes = [8, 8], strides = [1, 1]} : vector<8x24xf32> to vector<8x8xf32>
      %234 = vector.shape_cast %233 : vector<8x8xf32> to vector<1x8x8xf32>
      %235 = arith.index_cast %c3_i32_126 : i32 to index
      %c0_135 = arith.constant 0 : index
      %c0_136 = arith.constant 0 : index
      %c0_137 = arith.constant 0 : index
      %236 = vector.load %arg10[%235, %c0_135, %c0_136, %c0_137] : memref<4x1x8x8xf32, #tpu.memory_space<vmem>>, vector<1x1x8x8xf32>
      %237 = vector.shape_cast %236 : vector<1x1x8x8xf32> to vector<1x8x8xf32>
      %238 = vector.shape_cast %234 : vector<1x8x8xf32> to vector<1x1x8x8xf32>
      tpu.vector_store %arg10[%235, %c0_135, %c0_136, %c0_137], %238 {strides = array<i32>} : memref<4x1x8x8xf32, #tpu.memory_space<vmem>>, vector<1x1x8x8xf32>,
      %239 = vector.extract_strided_slice %226 {offsets = [0, 16], sizes = [8, 8], strides = [1, 1]} : vector<8x24xf32> to vector<8x8xf32>
      %240 = vector.shape_cast %239 : vector<8x8xf32> to vector<1x8x8xf32>
      %241 = arith.index_cast %c3_i32_126 : i32 to index
      %c0_138 = arith.constant 0 : index
      %c0_139 = arith.constant 0 : index
      %c0_140 = arith.constant 0 : index
      %242 = vector.load %arg11[%241, %c0_138, %c0_139, %c0_140] : memref<4x1x8x8xf32, #tpu.memory_space<vmem>>, vector<1x1x8x8xf32>
      %243 = vector.shape_cast %242 : vector<1x1x8x8xf32> to vector<1x8x8xf32>
      %244 = vector.shape_cast %240 : vector<1x8x8xf32> to vector<1x1x8x8xf32>
      tpu.vector_store %arg11[%241, %c0_138, %c0_139, %c0_140], %244 {strides = array<i32>} : memref<4x1x8x8xf32, #tpu.memory_space<vmem>>, vector<1x1x8x8xf32>,
      %c4_i32_141 = arith.constant 4 : i32
    } else {
    }
    %c8_i32 = arith.constant 8 : i32
    %3 = arith.muli %arg1, %c8_i32 : i32
    %4 = tpu.assume_multiple %3, 8 : i32
    %cst = arith.constant 0.000000e+00 : f32
    %5 = vector.broadcast %cst : f32 to vector<8x32xf32>
    %c0_i32_1 = arith.constant 0 : i32
    %6 = arith.index_cast %c0_i32_1 : i32 to index
    %c0 = arith.constant 0 : index
    %7 = arith.index_cast %4 : i32 to index
    %c0_2 = arith.constant 0 : index
    %8 = vector.load %arg9[%6, %c0, %7, %c0_2] : memref<4x1x8x8xf32, #tpu.memory_space<vmem>>, vector<1x1x8x8xf32>
    %9 = vector.shape_cast %8 : vector<1x1x8x8xf32> to vector<1x8x8xf32>
    %10 = arith.index_cast %c0_i32_1 : i32 to index
    %c0_3 = arith.constant 0 : index
    %c0_4 = arith.constant 0 : index
    %c0_5 = arith.constant 0 : index
    %11 = vector.load %arg10[%10, %c0_3, %c0_4, %c0_5] : memref<4x1x8x8xf32, #tpu.memory_space<vmem>>, vector<1x1x8x8xf32>
    %12 = vector.shape_cast %11 : vector<1x1x8x8xf32> to vector<1x8x8xf32>
    %13 = arith.index_cast %c0_i32_1 : i32 to index
    %c0_6 = arith.constant 0 : index
    %c0_7 = arith.constant 0 : index
    %c0_8 = arith.constant 0 : index
    %14 = vector.load %arg11[%13, %c0_6, %c0_7, %c0_8] : memref<4x1x8x8xf32, #tpu.memory_space<vmem>>, vector<1x1x8x8xf32>
    %15 = vector.shape_cast %14 : vector<1x1x8x8xf32> to vector<1x8x8xf32>
    "tpu.trace_start"() <{level = 10 : i32, message = "bqd,bkd->bqk"}> : () -> ()
    %cst_9 = arith.constant dense<0.000000e+00> : vector<1x8x8xf32>
    %16 = tpu.matmul %9, %12, %cst_9 {dimension_numbers = #tpu.dot_dimension_numbers<[2], [2], [1], [1], [0, 0, 0, 1, 1, 1], [0], [0]>} : vector<1x8x8xf32>, vector<1x8x8xf32>, vector<1x8x8xf32> -> vector<1x8x8xf32>
    "tpu.trace_stop"() : () -> ()
    %cst_10 = arith.constant dense<0xFF800000> : vector<1x8xf32>
    %17 = vector.multi_reduction <maximumf>, %16, %cst_10 [2] : vector<1x8x8xf32> to vector<1x8xf32>
    %18 = vector.shape_cast %17 : vector<1x8xf32> to vector<1x8x1xf32>
    %19 = vector.broadcast %18 : vector<1x8x1xf32> to vector<1x8x8xf32>
    %20 = arith.subf %16, %19 : vector<1x8x8xf32>
    %21 = math.exp %20 : vector<1x8x8xf32>
    %cst_11 = arith.constant dense<0.000000e+00> : vector<1x8xf32>
    %22 = vector.multi_reduction <add>, %21, %cst_11 [2] : vector<1x8x8xf32> to vector<1x8xf32>
    %23 = vector.shape_cast %22 : vector<1x8xf32> to vector<1x8x1xf32>
    %24 = tpu.reciprocal %23 : vector<1x8x1xf32> -> vector<1x8x1xf32>
    %25 = vector.broadcast %24 : vector<1x8x1xf32> to vector<1x8x8xf32>
    %26 = arith.mulf %21, %25 : vector<1x8x8xf32>
    %27 = vector.shape_cast %26 : vector<1x8x8xf32> to vector<1x1x8x8xf32>
    %c0_12 = arith.constant 0 : index
    %28 = arith.index_cast %c0_i32_1 : i32 to index
    %c0_13 = arith.constant 0 : index
    %c0_14 = arith.constant 0 : index
    %29 = vector.load %arg8[%c0_12, %28, %c0_13, %c0_14] : memref<1x4x8x8xf32, #tpu.memory_space<vmem>>, vector<1x1x8x8xf32>
    tpu.vector_store %arg8[%c0_12, %28, %c0_13, %c0_14], %27 {strides = array<i32>} : memref<1x4x8x8xf32, #tpu.memory_space<vmem>>, vector<1x1x8x8xf32>,
    "tpu.trace_start"() <{level = 10 : i32, message = "bqk,bkd->bqd"}> : () -> ()
    %cst_15 = arith.constant dense<0.000000e+00> : vector<1x8x8xf32>
    %30 = tpu.matmul %26, %15, %cst_15 {dimension_numbers = #tpu.dot_dimension_numbers<[2], [1], [1], [2], [0, 0, 0, 1, 1, 2], [0], [0]>} : vector<1x8x8xf32>, vector<1x8x8xf32>, vector<1x8x8xf32> -> vector<1x8x8xf32>
    "tpu.trace_stop"() : () -> ()
    %31 = vector.shape_cast %30 : vector<1x8x8xf32> to vector<8x8xf32>
    %32 = arith.index_cast %c0_i32_1 : i32 to index
    %c0_16 = arith.constant 0 : index
    %c0_17 = arith.constant 0 : index
    %33 = vector.load %arg5[%32, %c0_16, %c0_17] : memref<4x32x8xf32, #tpu.memory_space<vmem>>, vector<1x32x8xf32>
    %34 = vector.shape_cast %33 : vector<1x32x8xf32> to vector<32x8xf32>
    %cst_18 = arith.constant dense<0.000000e+00> : vector<8x32xf32>
    %35 = tpu.matmul %31, %34, %cst_18 {dimension_numbers = #tpu.dot_dimension_numbers<[1], [1], [0], [0], [0, 0, 1, 0], [], []>} : vector<8x8xf32>, vector<32x8xf32>, vector<8x32xf32> -> vector<8x32xf32>
    %36 = arith.addf %5, %35 : vector<8x32xf32>
    %c1_i32 = arith.constant 1 : i32
    %37 = arith.index_cast %c1_i32 : i32 to index
    %c0_19 = arith.constant 0 : index
    %38 = arith.index_cast %4 : i32 to index
    %c0_20 = arith.constant 0 : index
    %39 = vector.load %arg9[%37, %c0_19, %38, %c0_20] : memref<4x1x8x8xf32, #tpu.memory_space<vmem>>, vector<1x1x8x8xf32>
    %40 = vector.shape_cast %39 : vector<1x1x8x8xf32> to vector<1x8x8xf32>
    %41 = arith.index_cast %c1_i32 : i32 to index
    %c0_21 = arith.constant 0 : index
    %c0_22 = arith.constant 0 : index
    %c0_23 = arith.constant 0 : index
    %42 = vector.load %arg10[%41, %c0_21, %c0_22, %c0_23] : memref<4x1x8x8xf32, #tpu.memory_space<vmem>>, vector<1x1x8x8xf32>
    %43 = vector.shape_cast %42 : vector<1x1x8x8xf32> to vector<1x8x8xf32>
    %44 = arith.index_cast %c1_i32 : i32 to index
    %c0_24 = arith.constant 0 : index
    %c0_25 = arith.constant 0 : index
    %c0_26 = arith.constant 0 : index
    %45 = vector.load %arg11[%44, %c0_24, %c0_25, %c0_26] : memref<4x1x8x8xf32, #tpu.memory_space<vmem>>, vector<1x1x8x8xf32>
    %46 = vector.shape_cast %45 : vector<1x1x8x8xf32> to vector<1x8x8xf32>
    "tpu.trace_start"() <{level = 10 : i32, message = "bqd,bkd->bqk"}> : () -> ()
    %cst_27 = arith.constant dense<0.000000e+00> : vector<1x8x8xf32>
    %47 = tpu.matmul %40, %43, %cst_27 {dimension_numbers = #tpu.dot_dimension_numbers<[2], [2], [1], [1], [0, 0, 0, 1, 1, 1], [0], [0]>} : vector<1x8x8xf32>, vector<1x8x8xf32>, vector<1x8x8xf32> -> vector<1x8x8xf32>
    "tpu.trace_stop"() : () -> ()
    %cst_28 = arith.constant dense<0xFF800000> : vector<1x8xf32>
    %48 = vector.multi_reduction <maximumf>, %47, %cst_28 [2] : vector<1x8x8xf32> to vector<1x8xf32>
    %49 = vector.shape_cast %48 : vector<1x8xf32> to vector<1x8x1xf32>
    %50 = vector.broadcast %49 : vector<1x8x1xf32> to vector<1x8x8xf32>
    %51 = arith.subf %47, %50 : vector<1x8x8xf32>
    %52 = math.exp %51 : vector<1x8x8xf32>
    %cst_29 = arith.constant dense<0.000000e+00> : vector<1x8xf32>
    %53 = vector.multi_reduction <add>, %52, %cst_29 [2] : vector<1x8x8xf32> to vector<1x8xf32>
    %54 = vector.shape_cast %53 : vector<1x8xf32> to vector<1x8x1xf32>
    %55 = tpu.reciprocal %54 : vector<1x8x1xf32> -> vector<1x8x1xf32>
    %56 = vector.broadcast %55 : vector<1x8x1xf32> to vector<1x8x8xf32>
    %57 = arith.mulf %52, %56 : vector<1x8x8xf32>
    %58 = vector.shape_cast %57 : vector<1x8x8xf32> to vector<1x1x8x8xf32>
    %c0_30 = arith.constant 0 : index
    %59 = arith.index_cast %c1_i32 : i32 to index
    %c0_31 = arith.constant 0 : index
    %c0_32 = arith.constant 0 : index
    %60 = vector.load %arg8[%c0_30, %59, %c0_31, %c0_32] : memref<1x4x8x8xf32, #tpu.memory_space<vmem>>, vector<1x1x8x8xf32>
    tpu.vector_store %arg8[%c0_30, %59, %c0_31, %c0_32], %58 {strides = array<i32>} : memref<1x4x8x8xf32, #tpu.memory_space<vmem>>, vector<1x1x8x8xf32>,
    "tpu.trace_start"() <{level = 10 : i32, message = "bqk,bkd->bqd"}> : () -> ()
    %cst_33 = arith.constant dense<0.000000e+00> : vector<1x8x8xf32>
    %61 = tpu.matmul %57, %46, %cst_33 {dimension_numbers = #tpu.dot_dimension_numbers<[2], [1], [1], [2], [0, 0, 0, 1, 1, 2], [0], [0]>} : vector<1x8x8xf32>, vector<1x8x8xf32>, vector<1x8x8xf32> -> vector<1x8x8xf32>
    "tpu.trace_stop"() : () -> ()
    %62 = vector.shape_cast %61 : vector<1x8x8xf32> to vector<8x8xf32>
    %63 = arith.index_cast %c1_i32 : i32 to index
    %c0_34 = arith.constant 0 : index
    %c0_35 = arith.constant 0 : index
    %64 = vector.load %arg5[%63, %c0_34, %c0_35] : memref<4x32x8xf32, #tpu.memory_space<vmem>>, vector<1x32x8xf32>
    %65 = vector.shape_cast %64 : vector<1x32x8xf32> to vector<32x8xf32>
    %cst_36 = arith.constant dense<0.000000e+00> : vector<8x32xf32>
    %66 = tpu.matmul %62, %65, %cst_36 {dimension_numbers = #tpu.dot_dimension_numbers<[1], [1], [0], [0], [0, 0, 1, 0], [], []>} : vector<8x8xf32>, vector<32x8xf32>, vector<8x32xf32> -> vector<8x32xf32>
    %67 = arith.addf %36, %66 : vector<8x32xf32>
    %c2_i32 = arith.constant 2 : i32
    %68 = arith.index_cast %c2_i32 : i32 to index
    %c0_37 = arith.constant 0 : index
    %69 = arith.index_cast %4 : i32 to index
    %c0_38 = arith.constant 0 : index
    %70 = vector.load %arg9[%68, %c0_37, %69, %c0_38] : memref<4x1x8x8xf32, #tpu.memory_space<vmem>>, vector<1x1x8x8xf32>
    %71 = vector.shape_cast %70 : vector<1x1x8x8xf32> to vector<1x8x8xf32>
    %72 = arith.index_cast %c2_i32 : i32 to index
    %c0_39 = arith.constant 0 : index
    %c0_40 = arith.constant 0 : index
    %c0_41 = arith.constant 0 : index
    %73 = vector.load %arg10[%72, %c0_39, %c0_40, %c0_41] : memref<4x1x8x8xf32, #tpu.memory_space<vmem>>, vector<1x1x8x8xf32>
    %74 = vector.shape_cast %73 : vector<1x1x8x8xf32> to vector<1x8x8xf32>
    %75 = arith.index_cast %c2_i32 : i32 to index
    %c0_42 = arith.constant 0 : index
    %c0_43 = arith.constant 0 : index
    %c0_44 = arith.constant 0 : index
    %76 = vector.load %arg11[%75, %c0_42, %c0_43, %c0_44] : memref<4x1x8x8xf32, #tpu.memory_space<vmem>>, vector<1x1x8x8xf32>
    %77 = vector.shape_cast %76 : vector<1x1x8x8xf32> to vector<1x8x8xf32>
    "tpu.trace_start"() <{level = 10 : i32, message = "bqd,bkd->bqk"}> : () -> ()
    %cst_45 = arith.constant dense<0.000000e+00> : vector<1x8x8xf32>
    %78 = tpu.matmul %71, %74, %cst_45 {dimension_numbers = #tpu.dot_dimension_numbers<[2], [2], [1], [1], [0, 0, 0, 1, 1, 1], [0], [0]>} : vector<1x8x8xf32>, vector<1x8x8xf32>, vector<1x8x8xf32> -> vector<1x8x8xf32>
    "tpu.trace_stop"() : () -> ()
    %cst_46 = arith.constant dense<0xFF800000> : vector<1x8xf32>
    %79 = vector.multi_reduction <maximumf>, %78, %cst_46 [2] : vector<1x8x8xf32> to vector<1x8xf32>
    %80 = vector.shape_cast %79 : vector<1x8xf32> to vector<1x8x1xf32>
    %81 = vector.broadcast %80 : vector<1x8x1xf32> to vector<1x8x8xf32>
    %82 = arith.subf %78, %81 : vector<1x8x8xf32>
    %83 = math.exp %82 : vector<1x8x8xf32>
    %cst_47 = arith.constant dense<0.000000e+00> : vector<1x8xf32>
    %84 = vector.multi_reduction <add>, %83, %cst_47 [2] : vector<1x8x8xf32> to vector<1x8xf32>
    %85 = vector.shape_cast %84 : vector<1x8xf32> to vector<1x8x1xf32>
    %86 = tpu.reciprocal %85 : vector<1x8x1xf32> -> vector<1x8x1xf32>
    %87 = vector.broadcast %86 : vector<1x8x1xf32> to vector<1x8x8xf32>
    %88 = arith.mulf %83, %87 : vector<1x8x8xf32>
    %89 = vector.shape_cast %88 : vector<1x8x8xf32> to vector<1x1x8x8xf32>
    %c0_48 = arith.constant 0 : index
    %90 = arith.index_cast %c2_i32 : i32 to index
    %c0_49 = arith.constant 0 : index
    %c0_50 = arith.constant 0 : index
    %91 = vector.load %arg8[%c0_48, %90, %c0_49, %c0_50] : memref<1x4x8x8xf32, #tpu.memory_space<vmem>>, vector<1x1x8x8xf32>
    tpu.vector_store %arg8[%c0_48, %90, %c0_49, %c0_50], %89 {strides = array<i32>} : memref<1x4x8x8xf32, #tpu.memory_space<vmem>>, vector<1x1x8x8xf32>,
    "tpu.trace_start"() <{level = 10 : i32, message = "bqk,bkd->bqd"}> : () -> ()
    %cst_51 = arith.constant dense<0.000000e+00> : vector<1x8x8xf32>
    %92 = tpu.matmul %88, %77, %cst_51 {dimension_numbers = #tpu.dot_dimension_numbers<[2], [1], [1], [2], [0, 0, 0, 1, 1, 2], [0], [0]>} : vector<1x8x8xf32>, vector<1x8x8xf32>, vector<1x8x8xf32> -> vector<1x8x8xf32>
    "tpu.trace_stop"() : () -> ()
    %93 = vector.shape_cast %92 : vector<1x8x8xf32> to vector<8x8xf32>
    %94 = arith.index_cast %c2_i32 : i32 to index
    %c0_52 = arith.constant 0 : index
    %c0_53 = arith.constant 0 : index
    %95 = vector.load %arg5[%94, %c0_52, %c0_53] : memref<4x32x8xf32, #tpu.memory_space<vmem>>, vector<1x32x8xf32>
    %96 = vector.shape_cast %95 : vector<1x32x8xf32> to vector<32x8xf32>
    %cst_54 = arith.constant dense<0.000000e+00> : vector<8x32xf32>
    %97 = tpu.matmul %93, %96, %cst_54 {dimension_numbers = #tpu.dot_dimension_numbers<[1], [1], [0], [0], [0, 0, 1, 0], [], []>} : vector<8x8xf32>, vector<32x8xf32>, vector<8x32xf32> -> vector<8x32xf32>
    %98 = arith.addf %67, %97 : vector<8x32xf32>
    %c3_i32 = arith.constant 3 : i32
    %99 = arith.index_cast %c3_i32 : i32 to index
    %c0_55 = arith.constant 0 : index
    %100 = arith.index_cast %4 : i32 to index
    %c0_56 = arith.constant 0 : index
    %101 = vector.load %arg9[%99, %c0_55, %100, %c0_56] : memref<4x1x8x8xf32, #tpu.memory_space<vmem>>, vector<1x1x8x8xf32>
    %102 = vector.shape_cast %101 : vector<1x1x8x8xf32> to vector<1x8x8xf32>
    %103 = arith.index_cast %c3_i32 : i32 to index
    %c0_57 = arith.constant 0 : index
    %c0_58 = arith.constant 0 : index
    %c0_59 = arith.constant 0 : index
    %104 = vector.load %arg10[%103, %c0_57, %c0_58, %c0_59] : memref<4x1x8x8xf32, #tpu.memory_space<vmem>>, vector<1x1x8x8xf32>
    %105 = vector.shape_cast %104 : vector<1x1x8x8xf32> to vector<1x8x8xf32>
    %106 = arith.index_cast %c3_i32 : i32 to index
    %c0_60 = arith.constant 0 : index
    %c0_61 = arith.constant 0 : index
    %c0_62 = arith.constant 0 : index
    %107 = vector.load %arg11[%106, %c0_60, %c0_61, %c0_62] : memref<4x1x8x8xf32, #tpu.memory_space<vmem>>, vector<1x1x8x8xf32>
    %108 = vector.shape_cast %107 : vector<1x1x8x8xf32> to vector<1x8x8xf32>
    "tpu.trace_start"() <{level = 10 : i32, message = "bqd,bkd->bqk"}> : () -> ()
    %cst_63 = arith.constant dense<0.000000e+00> : vector<1x8x8xf32>
    %109 = tpu.matmul %102, %105, %cst_63 {dimension_numbers = #tpu.dot_dimension_numbers<[2], [2], [1], [1], [0, 0, 0, 1, 1, 1], [0], [0]>} : vector<1x8x8xf32>, vector<1x8x8xf32>, vector<1x8x8xf32> -> vector<1x8x8xf32>
    "tpu.trace_stop"() : () -> ()
    %cst_64 = arith.constant dense<0xFF800000> : vector<1x8xf32>
    %110 = vector.multi_reduction <maximumf>, %109, %cst_64 [2] : vector<1x8x8xf32> to vector<1x8xf32>
    %111 = vector.shape_cast %110 : vector<1x8xf32> to vector<1x8x1xf32>
    %112 = vector.broadcast %111 : vector<1x8x1xf32> to vector<1x8x8xf32>
    %113 = arith.subf %109, %112 : vector<1x8x8xf32>
    %114 = math.exp %113 : vector<1x8x8xf32>
    %cst_65 = arith.constant dense<0.000000e+00> : vector<1x8xf32>
    %115 = vector.multi_reduction <add>, %114, %cst_65 [2] : vector<1x8x8xf32> to vector<1x8xf32>
    %116 = vector.shape_cast %115 : vector<1x8xf32> to vector<1x8x1xf32>
    %117 = tpu.reciprocal %116 : vector<1x8x1xf32> -> vector<1x8x1xf32>
    %118 = vector.broadcast %117 : vector<1x8x1xf32> to vector<1x8x8xf32>
    %119 = arith.mulf %114, %118 : vector<1x8x8xf32>
    %120 = vector.shape_cast %119 : vector<1x8x8xf32> to vector<1x1x8x8xf32>
    %c0_66 = arith.constant 0 : index
    %121 = arith.index_cast %c3_i32 : i32 to index
    %c0_67 = arith.constant 0 : index
    %c0_68 = arith.constant 0 : index
    %122 = vector.load %arg8[%c0_66, %121, %c0_67, %c0_68] : memref<1x4x8x8xf32, #tpu.memory_space<vmem>>, vector<1x1x8x8xf32>
    tpu.vector_store %arg8[%c0_66, %121, %c0_67, %c0_68], %120 {strides = array<i32>} : memref<1x4x8x8xf32, #tpu.memory_space<vmem>>, vector<1x1x8x8xf32>,
    "tpu.trace_start"() <{level = 10 : i32, message = "bqk,bkd->bqd"}> : () -> ()
    %cst_69 = arith.constant dense<0.000000e+00> : vector<1x8x8xf32>
    %123 = tpu.matmul %119, %108, %cst_69 {dimension_numbers = #tpu.dot_dimension_numbers<[2], [1], [1], [2], [0, 0, 0, 1, 1, 2], [0], [0]>} : vector<1x8x8xf32>, vector<1x8x8xf32>, vector<1x8x8xf32> -> vector<1x8x8xf32>
    "tpu.trace_stop"() : () -> ()
    %124 = vector.shape_cast %123 : vector<1x8x8xf32> to vector<8x8xf32>
    %125 = arith.index_cast %c3_i32 : i32 to index
    %c0_70 = arith.constant 0 : index
    %c0_71 = arith.constant 0 : index
    %126 = vector.load %arg5[%125, %c0_70, %c0_71] : memref<4x32x8xf32, #tpu.memory_space<vmem>>, vector<1x32x8xf32>
    %127 = vector.shape_cast %126 : vector<1x32x8xf32> to vector<32x8xf32>
    %cst_72 = arith.constant dense<0.000000e+00> : vector<8x32xf32>
    %128 = tpu.matmul %124, %127, %cst_72 {dimension_numbers = #tpu.dot_dimension_numbers<[1], [1], [0], [0], [0, 0, 1, 0], [], []>} : vector<8x8xf32>, vector<32x8xf32>, vector<8x32xf32> -> vector<8x32xf32>
    %129 = arith.addf %98, %128 : vector<8x32xf32>
    %c4_i32 = arith.constant 4 : i32
    %c0_73 = arith.constant 0 : index
    %c0_74 = arith.constant 0 : index
    %130 = vector.load %arg6[%c0_73, %c0_74] : memref<1x32xf32, #tpu.memory_space<vmem>>, vector<1x32xf32>
    %131 = vector.broadcast %130 : vector<1x32xf32> to vector<8x32xf32>
    %132 = arith.addf %129, %131 : vector<8x32xf32>
    %133 = vector.shape_cast %132 : vector<8x32xf32> to vector<1x8x32xf32>
    %c0_75 = arith.constant 0 : index
    %c0_76 = arith.constant 0 : index
    %c0_77 = arith.constant 0 : index
    %134 = vector.load %arg7[%c0_75, %c0_76, %c0_77] : memref<1x8x32xf32, #tpu.memory_space<vmem>>, vector<1x8x32xf32>
    tpu.vector_store %arg7[%c0_75, %c0_76, %c0_77], %133 {strides = array<i32>} : memref<1x8x32xf32, #tpu.memory_space<vmem>>, vector<1x8x32xf32>,
    return
  }
  func.func @transform_0(%arg0: i32, %arg1: i32) -> (i32, i32, i32) {
    %c0_i32 = arith.constant 0 : i32
    %c0_i32_0 = arith.constant 0 : i32
    %c0_i32_1 = arith.constant 0 : i32
    return %arg0, %c0_i32, %c0_i32_0 : i32, i32, i32
  }
  func.func @transform_1(%arg0: i32, %arg1: i32) -> (i32, i32, i32) {
    %c0_i32 = arith.constant 0 : i32
    %c0_i32_0 = arith.constant 0 : i32
    %c0_i32_1 = arith.constant 0 : i32
    %c0_i32_2 = arith.constant 0 : i32
    return %c0_i32, %c0_i32_0, %c0_i32_1 : i32, i32, i32
  }
  func.func @transform_2(%arg0: i32, %arg1: i32) -> (i32, i32, i32) {
    %c0_i32 = arith.constant 0 : i32
    %c0_i32_0 = arith.constant 0 : i32
    %c0_i32_1 = arith.constant 0 : i32
    %c0_i32_2 = arith.constant 0 : i32
    return %c0_i32, %c0_i32_0, %c0_i32_1 : i32, i32, i32
  }
  func.func @transform_3(%arg0: i32, %arg1: i32) -> (i32, i32, i32) {
    %c0_i32 = arith.constant 0 : i32
    %c0_i32_0 = arith.constant 0 : i32
    %c0_i32_1 = arith.constant 0 : i32
    %c0_i32_2 = arith.constant 0 : i32
    return %c0_i32, %c0_i32_0, %c0_i32_1 : i32, i32, i32
  }
  func.func @transform_4(%arg0: i32, %arg1: i32) -> (i32, i32) {
    %c0_i32 = arith.constant 0 : i32
    %c0_i32_0 = arith.constant 0 : i32
    %c0_i32_1 = arith.constant 0 : i32
    return %c0_i32, %c0_i32_0 : i32, i32
  }
  func.func @transform_5(%arg0: i32, %arg1: i32) -> (i32, i32, i32) {
    %c0_i32 = arith.constant 0 : i32
    %c0_i32_0 = arith.constant 0 : i32
    return %arg0, %arg1, %c0_i32 : i32, i32, i32
  }
  func.func @transform_6(%arg0: i32, %arg1: i32) -> (i32, i32, i32, i32) {
    %c0_i32 = arith.constant 0 : i32
    %c0_i32_0 = arith.constant 0 : i32
    %c0_i32_1 = arith.constant 0 : i32
    return %arg0, %c0_i32, %arg1, %c0_i32_0 : i32, i32, i32, i32
  }
}

</mosaic_0001>

<llo_original>
// kernel: tpu_custom_call.1
$region0: #{tpu_custom_call.1}
  #allocation0 [shape = 'u32[]', space=smem, size = 0x4, offset = 0x4, fixed_abs, tag = 'smem constant byte address 0x4 - core index']
  #allocation1 [shape = 'u32[144,128]{1,0:T(1,128)}', space=vmem, size = 0x12000, scoped, tag = 'internal scratch']
  #allocation2 [shape = 'f32[4,1,8,8]{3,2,1,0:T(8,128)}', space=vmem, size = 0x4000, scoped, tag = 'scratch operand']
  #allocation3 [shape = 'f32[4,1,8,8]{3,2,1,0:T(8,128)}', space=vmem, size = 0x4000, scoped, tag = 'scratch operand']
  #allocation4 [shape = 'f32[4,1,8,8]{3,2,1,0:T(8,128)}', space=vmem, size = 0x4000, scoped, tag = 'scratch operand']
  %s0 = inlined_call_operand.vmem [shape: f32[2,8,32], index: 0, kind: input, shape index: {}]
  %s1 = inlined_call_operand.vmem [shape: f32[4,24,32], index: 1, kind: input, shape index: {}]
  %s2 = inlined_call_operand.vmem [shape: f32[4,1,24], index: 2, kind: input, shape index: {}]
  %s3 = inlined_call_operand.vmem [shape: f32[4,32,8], index: 3, kind: input, shape index: {}]
  %s4 = inlined_call_operand.vmem [shape: f32[1,32], index: 4, kind: input, shape index: {}]
  %s5 = inlined_call_operand.hbm [shape: f32[2,8,32], index: 5, kind: output, shape index: {0}]
  %s6 = inlined_call_operand.hbm [shape: f32[2,4,8,8], index: 6, kind: output, shape index: {1}]
  %7 = xla_tuple %s5, %s6
  %s8 = sld [smem:[#allocation0]]
  $region65: #{tpu_custom_call.1} parent=0
    _
  %s10 = ssub.s32 1, %s8
  %s11 = scalar_select 0, %s10, %s8
  $region1: #{tpu_custom_call.1} parent=0
    #allocation5 [shape = 'u8[8192]{0}', space=vmem, size = 0x2000, scoped, tag = 'output window, operand 0']
    #allocation6 [shape = 's32[2]{0}', space=sflag, size = 0x8, scoped, tag = 'scoped memory for tpu_custom_call.1']
    #allocation7 [shape = 'u8[32768]{0}', space=vmem, size = 0x8000, scoped, tag = 'output window, operand 1']
    #allocation8 [shape = 's32[2]{0}', space=sflag, size = 0x8, scoped, tag = 'scoped memory for tpu_custom_call.1']
    %12 = vsyncpa [#allocation6], 0
    %s13 = scalar_lea.sflag [#allocation6], 1
    %14 = vsyncpa %s13, 0
    %15 = vsyncpa [#allocation8], 0
    %s16 = scalar_lea.sflag [#allocation8], 1
    %17 = vsyncpa %s16, 0
    loop: start=0, step=1, limit=4
    $region2: #{tpu_custom_call.1} parent=1 // loop_pre_header
      _
    $region3: #{tpu_custom_call.1} parent=1 // loop_header
      %s19 = sphi 0, %s23
      %p20 = scmp.ge.s32.totalorder %s19, 4
      %s26 = sphi 0, %s38
      %s27 = sphi 0, %s34
      %s28 = sphi 0, %s26
      %s29 = sphi 0, %s27
      %s30 = sphi 0, %s28
      %s31 = sphi 0, %s29
      %s41 = sphi 0, %s43
      %s44 = sphi 0, %s41
      %s45 = sphi 0, %s44
      %s61 = sphi 0, %s45
      %s65 = sphi 0, %s65
      %s67 = sphi 0, %s65
      %s68 = sphi 0, %s67
      %s82 = sphi 0, %s68
      %s86 = sphi 0, %s86
      %s88 = sphi 0, %s86
      %s89 = sphi 0, %s88
      %s103 = sphi 0, %s89
      %s107 = sphi 0, %s107
      %s109 = sphi 0, %s107
      %s110 = sphi 0, %s109
      %s124 = sphi 0, %s110
      %s128 = sphi 0, %s128
      %s130 = sphi 0, %s128
      %s131 = sphi 0, %s130
      %s145 = sphi 0, %s131
      %s153 = sphi 0, %s155
      %s156 = sphi 0, %s153
      %s157 = sphi 0, %s156
      %s173 = sphi 0, %s157
      %s181 = sphi 0, %s183
      %s184 = sphi 0, %s181
      %s185 = sphi 0, %s184
      %s201 = sphi 0, %s185
    $region4: #{tpu_custom_call.1} parent=1 // loop_header_branch
      %22 = sbr.rel (%p20) target = $region8
    $region5: #{tpu_custom_call.1} parent=1 // loop_body
      %s24 = ssub.s32 %s19, 1
      %s25 = ssub.s32 %s19, 2
      %s32 = sadd.s32 1, %s27
      %p33 = scmp.ge.s32.totalorder %s32, 1
      %s34 = scalar_select %p33, 0, %s32
      %s35 = sadd.s32 1, %s26
      %s36 = scalar_select %p33, %s35, %s26
      %p37 = scmp.ge.s32.totalorder %s36, 2
      %s38 = scalar_select %p37, 0, %s36
      %s39 = ssub.s32 %s26, %s38
      %p40 = scmp.eq.s32.totalorder %s39, 0
      %s42 = sadd.s32 %s41, 1
      %s43 = scalar_select %p40, %s41, %s42
      %p46 = pneg %p40
      %p47 = scmp.eq.s32.totalorder %s19, 1
      %p48 = por %p46, %p47
      %p49 = scmp.ne.s32.totalorder %s41, %s44
      %p50 = scmp.eq.s32.totalorder %s19, 0
      %p51 = por %p49, %p50
      %p52 = scmp.ne.s32.totalorder %s41, %s44
      %p53 = scmp.eq.s32.totalorder %s24, 1
      %p54 = por %p52, %p53
      %p55 = scmp.ne.s32.totalorder %s44, %s45
      %p56 = scmp.eq.s32.totalorder %s24, 0
      %p57 = por %p55, %p56
      %p58 = scmp.ne.s32.totalorder %s44, %s45
      %p59 = scmp.eq.s32.totalorder %s25, 1
      %p60 = por %p58, %p59
      %p62 = scmp.ne.s32.totalorder %s45, %s61
      %p63 = scmp.eq.s32.totalorder %s25, 0
      %p64 = por %p62, %p63
      %s66 = sadd.s32 %s65, 1
      %p69 = scmp.eq.s32.totalorder %s19, 1
      %p70 = scmp.ne.s32.totalorder %s65, %s67
      %p71 = scmp.eq.s32.totalorder %s19, 0
      %p72 = por %p70, %p71
      %p73 = scmp.ne.s32.totalorder %s65, %s67
      %p74 = scmp.eq.s32.totalorder %s24, 1
      %p75 = por %p73, %p74
      %p76 = scmp.ne.s32.totalorder %s67, %s68
      %p77 = scmp.eq.s32.totalorder %s24, 0
      %p78 = por %p76, %p77
      %p79 = scmp.ne.s32.totalorder %s67, %s68
      %p80 = scmp.eq.s32.totalorder %s25, 1
      %p81 = por %p79, %p80
      %p83 = scmp.ne.s32.totalorder %s68, %s82
      %p84 = scmp.eq.s32.totalorder %s25, 0
      %p85 = por %p83, %p84
      %s87 = sadd.s32 %s86, 1
      %p90 = scmp.eq.s32.totalorder %s19, 1
      %p91 = scmp.ne.s32.totalorder %s86, %s88
      %p92 = scmp.eq.s32.totalorder %s19, 0
      %p93 = por %p91, %p92
      %p94 = scmp.ne.s32.totalorder %s86, %s88
      %p95 = scmp.eq.s32.totalorder %s24, 1
      %p96 = por %p94, %p95
      %p97 = scmp.ne.s32.totalorder %s88, %s89
      %p98 = scmp.eq.s32.totalorder %s24, 0
      %p99 = por %p97, %p98
      %p100 = scmp.ne.s32.totalorder %s88, %s89
      %p101 = scmp.eq.s32.totalorder %s25, 1
      %p102 = por %p100, %p101
      %p104 = scmp.ne.s32.totalorder %s89, %s103
      %p105 = scmp.eq.s32.totalorder %s25, 0
      %p106 = por %p104, %p105
      %s108 = sadd.s32 %s107, 1
      %p111 = scmp.eq.s32.totalorder %s19, 1
      %p112 = scmp.ne.s32.totalorder %s107, %s109
      %p113 = scmp.eq.s32.totalorder %s19, 0
      %p114 = por %p112, %p113
      %p115 = scmp.ne.s32.totalorder %s107, %s109
      %p116 = scmp.eq.s32.totalorder %s24, 1
      %p117 = por %p115, %p116
      %p118 = scmp.ne.s32.totalorder %s109, %s110
      %p119 = scmp.eq.s32.totalorder %s24, 0
      %p120 = por %p118, %p119
      %p121 = scmp.ne.s32.totalorder %s109, %s110
      %p122 = scmp.eq.s32.totalorder %s25, 1
      %p123 = por %p121, %p122
      %p125 = scmp.ne.s32.totalorder %s110, %s124
      %p126 = scmp.eq.s32.totalorder %s25, 0
      %p127 = por %p125, %p126
      %s129 = sadd.s32 %s128, 1
      %p132 = scmp.eq.s32.totalorder %s19, 1
      %p133 = scmp.ne.s32.totalorder %s128, %s130
      %p134 = scmp.eq.s32.totalorder %s19, 0
      %p135 = por %p133, %p134
      %p136 = scmp.ne.s32.totalorder %s128, %s130
      %p137 = scmp.eq.s32.totalorder %s24, 1
      %p138 = por %p136, %p137
      %p139 = scmp.ne.s32.totalorder %s130, %s131
      %p140 = scmp.eq.s32.totalorder %s24, 0
      %p141 = por %p139, %p140
      %p142 = scmp.ne.s32.totalorder %s130, %s131
      %p143 = scmp.eq.s32.totalorder %s25, 1
      %p144 = por %p142, %p143
      %p146 = scmp.ne.s32.totalorder %s131, %s145
      %p147 = scmp.eq.s32.totalorder %s25, 0
      %p148 = por %p146, %p147
      %s149 = ssub.s32 %s26, %s38
      %s150 = ssub.s32 %s27, %s34
      %s151 = sor.u32 %s149, %s150
      %p152 = scmp.eq.s32.totalorder %s151, 0
      %s154 = sadd.s32 %s153, 1
      %s155 = scalar_select %p152, %s153, %s154
      %p158 = pneg %p152
      %p159 = scmp.eq.s32.totalorder %s19, 1
      %p160 = por %p158, %p159
      %p161 = scmp.ne.s32.totalorder %s153, %s156
      %p162 = scmp.eq.s32.totalorder %s19, 0
      %p163 = por %p161, %p162
      %p164 = scmp.ne.s32.totalorder %s153, %s156
      %p165 = scmp.eq.s32.totalorder %s24, 1
      %p166 = por %p164, %p165
      %p167 = scmp.ne.s32.totalorder %s156, %s157
      %p168 = scmp.eq.s32.totalorder %s24, 0
      %p169 = por %p167, %p168
      %p170 = scmp.ne.s32.totalorder %s156, %s157
      %p171 = scmp.eq.s32.totalorder %s25, 1
      %p172 = por %p170, %p171
      %p174 = scmp.ne.s32.totalorder %s157, %s173
      %p175 = scmp.eq.s32.totalorder %s25, 0
      %p176 = por %p174, %p175
      %s177 = ssub.s32 %s26, %s38
      %s178 = ssub.s32 %s27, %s34
      %s179 = sor.u32 %s177, %s178
      %p180 = scmp.eq.s32.totalorder %s179, 0
      %s182 = sadd.s32 %s181, 1
      %s183 = scalar_select %p180, %s181, %s182
      %p186 = pneg %p180
      %p187 = scmp.eq.s32.totalorder %s19, 1
      %p188 = por %p186, %p187
      %p189 = scmp.ne.s32.totalorder %s181, %s184
      %p190 = scmp.eq.s32.totalorder %s19, 0
      %p191 = por %p189, %p190
      %p192 = scmp.ne.s32.totalorder %s181, %s184
      %p193 = scmp.eq.s32.totalorder %s24, 1
      %p194 = por %p192, %p193
      %p195 = scmp.ne.s32.totalorder %s184, %s185
      %p196 = scmp.eq.s32.totalorder %s24, 0
      %p197 = por %p195, %p196
      %p198 = scmp.ne.s32.totalorder %s184, %s185
      %p199 = scmp.eq.s32.totalorder %s25, 1
      %p200 = por %p198, %p199
      %p202 = scmp.ne.s32.totalorder %s185, %s201
      %p203 = scmp.eq.s32.totalorder %s25, 0
      %p204 = por %p202, %p203
      %p205 = scmp.le.s32.totalorder 1, %s19
      %p206 = scmp.lt.s32.totalorder %s19, 3
      %p207 = pnand %p205, %p206
      %p208 = pneg %p207
      // Predicated region
      $region9: #{tpu_custom_call.1} parent=5 // pred_check
        _
      $region10: #{tpu_custom_call.1} parent=5 // pred_check_branch
        %210 = sbr.rel (%p207) target = $region12
      $region11: #{tpu_custom_call.1} parent=5 // pred_region
        %s211 = ssub.s32 %s19, 1
        // Predicated region
        $region13: #{tpu_custom_call.1} parent=11 // pred_check
          %p212 = pneg %p78
        $region14: #{tpu_custom_call.1} parent=11 // pred_check_branch
          %214 = sbr.rel (%p212) target = $region16
        $region15: #{tpu_custom_call.1} parent=11 // pred_region
          _
        $region16: #{tpu_custom_call.1} parent=11 // pred_fallthru
          _
        // Predicated region
        $region17: #{tpu_custom_call.1} parent=11 // pred_check
          %p215 = pneg %p99
        $region18: #{tpu_custom_call.1} parent=11 // pred_check_branch
          %217 = sbr.rel (%p215) target = $region20
        $region19: #{tpu_custom_call.1} parent=11 // pred_region
          _
        $region20: #{tpu_custom_call.1} parent=11 // pred_fallthru
          _
        // Predicated region
        $region21: #{tpu_custom_call.1} parent=11 // pred_check
          %p218 = pneg %p120
        $region22: #{tpu_custom_call.1} parent=11 // pred_check_branch
          %220 = sbr.rel (%p218) target = $region24
        $region23: #{tpu_custom_call.1} parent=11 // pred_region
          _
        $region24: #{tpu_custom_call.1} parent=11 // pred_fallthru
          _
        // Predicated region
        $region25: #{tpu_custom_call.1} parent=11 // pred_check
          %p221 = pneg %p141
        $region26: #{tpu_custom_call.1} parent=11 // pred_check_branch
          %223 = sbr.rel (%p221) target = $region28
        $region27: #{tpu_custom_call.1} parent=11 // pred_region
          _
        $region28: #{tpu_custom_call.1} parent=11 // pred_fallthru
          _
      $region12: #{tpu_custom_call.1} parent=5 // pred_fallthru
        _
      %p224 = scmp.lt.s32.totalorder %s19, 2
      // Predicated region
      $region29: #{tpu_custom_call.1} parent=5 // pred_check
        %p225 = pneg %p224
      $region30: #{tpu_custom_call.1} parent=5 // pred_check_branch
        %227 = sbr.rel (%p225) target = $region32
      $region31: #{tpu_custom_call.1} parent=5 // pred_region
        // Predicated region
        $region33: #{tpu_custom_call.1} parent=31 // pred_check
          %p228 = pneg %p51
        $region34: #{tpu_custom_call.1} parent=31 // pred_check_branch
          %230 = sbr.rel (%p228) target = $region36
        $region35: #{tpu_custom_call.1} parent=31 // pred_region
          %p231 = scmp.lt.s32.totalorder %s26, 1
          %s232 = scalar_select %p231, %s26, 1
          %s233 = smul.addr %s232, 8
          %s234 = scalar_lea.vmem %s0, %s233
        $region36: #{tpu_custom_call.1} parent=31 // pred_fallthru
          _
      $region32: #{tpu_custom_call.1} parent=5 // pred_fallthru
        _
      %p235 = scmp.le.s32.totalorder 1, %s19
      %p236 = scmp.lt.s32.totalorder %s19, 3
      %p237 = pnand %p235, %p236
      %p238 = pneg %p237
      // Predicated region
      $region37: #{tpu_custom_call.1} parent=5 // pred_check
        _
      $region38: #{tpu_custom_call.1} parent=5 // pred_check_branch
        %240 = sbr.rel (%p237) target = $region40
      $region39: #{tpu_custom_call.1} parent=5 // pred_region
        %s241 = ssub.s32 %s19, 1
        %p242 = scmp.lt.s32.totalorder %s28, 1
        %s243 = scalar_select %p242, %s28, 1
        %s244 = smul.addr %s243, 8
        %s245 = scalar_lea.vmem %s0, %s244
        %p246 = pneg %p57
        %p247 = pneg %p54
        %p248 = pneg %p78
        %p249 = pneg %p75
        %p250 = pneg %p99
        %p251 = pneg %p96
        %p252 = pneg %p120
        %p253 = pneg %p117
        %p254 = pneg %p141
        %p255 = pneg %p138
        %p256 = pneg %p169
        %p257 = pneg %p166
        %s258 = sand.u32 %s156, 1
        %s259 = scalar_lea.sflag [#allocation6], %s258
        %s260 = sand.u32 %s156, 1
        %s261 = smul.addr %s260, 8
        %s262 = scalar_lea.vmem [#allocation5], %s261
        %p263 = pneg %p197
        %p264 = pneg %p194
        %s265 = sand.u32 %s184, 1
        %s266 = scalar_lea.sflag [#allocation8], %s265
        %s267 = sand.u32 %s184, 1
        %s268 = smul.addr %s267, 32
        %s269 = scalar_lea.vmem [#allocation7], %s268
        %p270 = scmp.lt.s32.totalorder %s28, 1
        %s271 = scalar_select %p270, %s28, 1
        %s272 = smul.addr %s271, 8
        %s273 = scalar_lea.vmem %s0, %s272
        %p274 = scmp.eq.s32.totalorder %s29, 0
        // Predicated region
        $region41: #{tpu_custom_call.1} parent=39 // pred_check
          %p275 = pneg %p274
        $region42: #{tpu_custom_call.1} parent=39 // pred_check_branch
          %277 = sbr.rel (%p275) target = $region44
        $region43: #{tpu_custom_call.1} parent=39 // pred_region
          %v278 = vld [vmem:[%s273] sm:$0xff]
          %v279 = vld [vmem:[%s1] sm:$0xff]
          %v280 = vld [vmem:[%s1 + $0x8] sm:$0xff]
          %v281 = vld [vmem:[%s1 + $0x10] sm:$0xff]
          %v282 = vld [vmem:[%s2] sm:$0x1]
          %v284 = vlaneseq
          %v285 = vshrl.u32 %v284, 7
          %v286 = vsub.s32 0, %v285
          %v287 = vrot.slane %v282, %v286
          %vm289 = vcmask 261120
          %v291 = vsel %vm289, %v278, 0
          %v294 = vsel %vm289, %v279, 0
          %v297 = vsel %vm289, %v280, 0
          %v300 = vsel %vm289, %v281, 0
          %302 = vmatprep.subr.mxu0 0.0
          %303 = vmatpush1.xpose.msra.mxu0 %v294
          %304 = vmatprep.subr.mxu0 0.0
          %305 = vmatpush1.xpose.msra.mxu0 %v297
          %306 = vmatprep.subr.mxu0 0.0
          %307 = vmatpush1.xpose.msra.mxu0 %v300
          %308 = vmatprep.subr.mxu0 0.0
          %309 = vmatpush1.xpose.msra.mxu0 0.0
          %310 = vmatprep.subr.mxu0 0.0
          %311 = vmatpush1.xpose.msra.mxu0 0.0
          %312 = vmatprep.subr.mxu0 0.0
          %313 = vmatpush1.xpose.msra.mxu0 0.0
          %314 = vmatprep.subr.mxu0 0.0
          %315 = vmatpush1.xpose.msra.mxu0 0.0
          %316 = vmatprep.subr.mxu0 0.0
          %317 = vmatpush1.xpose.msra.mxu0 0.0
          %318 = vmatprep.subr.mxu0 0.0
          %319 = vmatpush1.xpose.msra.mxu0 0.0
          %320 = vmatprep.subr.mxu0 0.0
          %321 = vmatpush1.xpose.msra.mxu0 0.0
          %322 = vmatprep.subr.mxu0 0.0
          %323 = vmatpush1.xpose.msra.mxu0 0.0
          %324 = vmatprep.subr.mxu0 0.0
          %325 = vmatpush1.xpose.msra.mxu0 0.0
          %326 = vmatprep.subr.mxu0 0.0
          %327 = vmatpush1.xpose.msra.mxu0 0.0
          %328 = vmatprep.subr.mxu0 0.0
          %329 = vmatpush1.xpose.msra.mxu0 0.0
          %330 = vmatprep.subr.mxu0 0.0
          %331 = vmatpush1.xpose.msra.mxu0 0.0
          %332 = vmatprep.subr.mxu0 0.0
          %333 = vmatpush1.xpose.msra.mxu0 0.0
          %334 = vmatprep.subr.mxu0 0.0
          %335 = vmatpush1.xpose.msra.mxu0 0.0
          %336 = vmatprep.subr.mxu0 0.0
          %337 = vmatpush1.xpose.msra.mxu0 0.0
          %338 = vmatprep.subr.mxu0 0.0
          %339 = vmatpush1.xpose.msra.mxu0 0.0
          %340 = vmatprep.subr.mxu0 0.0
          %341 = vmatpush1.xpose.msra.mxu0 0.0
          %342 = vmatprep.subr.mxu0 0.0
          %343 = vmatpush1.xpose.msra.mxu0 0.0
          %344 = vmatprep.subr.mxu0 0.0
          %345 = vmatpush1.xpose.msra.mxu0 0.0
          %346 = vmatprep.subr.mxu0 0.0
          %347 = vmatpush1.xpose.msra.mxu0 0.0
          %348 = vmatprep.subr.mxu0 0.0
          %349 = vmatpush1.xpose.msra.mxu0 0.0
          %350 = vmatprep.subr.mxu0 0.0
          %351 = vmatpush1.xpose.msra.mxu0 0.0
          %352 = vmatprep.subr.mxu0 0.0
          %353 = vmatpush1.xpose.msra.mxu0 0.0
          %354 = vmatprep.subr.mxu0 0.0
          %355 = vmatpush1.xpose.msra.mxu0 0.0
          %356 = vmatprep.subr.mxu0 0.0
          %357 = vmatpush1.xpose.msra.mxu0 0.0
          %358 = vmatprep.subr.mxu0 0.0
          %359 = vmatpush1.xpose.msra.mxu0 0.0
          %360 = vmatprep.subr.mxu0 0.0
          %361 = vmatpush1.xpose.msra.mxu0 0.0
          %362 = vmatprep.subr.mxu0 0.0
          %363 = vmatpush1.xpose.msra.mxu0 0.0
          %364 = vmatprep.subr.mxu0 0.0
          %365 = vmatpush1.xpose.msra.mxu0 0.0
          %366 = vmatprep.mubr.f32.mxu0 0.0
          %367 = vmatmul.mubr.f32.gmra.mrb[0].mxu0 %v291
          %v368 = vpop.f32.mrb[0].mxu0
          %v369 = vadd.f32 %v287, %v368
          %v370 = vpop.f32.mrb[0].mxu0
          %371 = vdwg.mxu0
          %vm372 = vcmask 64512
          %373 = vst.msk [vmem:[#allocation2] sm:$0xff] %vm372, %v369
          %375 = vrot.lane.b32.xlu0 %v369, 120
          %v376 = vpop.permute.xlu0 %375
          %378 = vst.msk [vmem:[#allocation3] sm:$0xff] %vm372, %v376
          %379 = vrot.lane.b32.xlu0 %v369, 112
          %v380 = vpop.permute.xlu0 %379
          %382 = vst.msk [vmem:[#allocation4] sm:$0xff] %vm372, %v380
          %s383 = scalar_lea.vmem %s1, 24
          %v384 = vld [vmem:[%s383] sm:$0xff]
          %v385 = vld [vmem:[%s383 + $0x8] sm:$0xff]
          %v386 = vld [vmem:[%s383 + $0x10] sm:$0xff]
          %s387 = scalar_lea.vmem %s2, 1
          %v388 = vld [vmem:[%s387] sm:$0x1]
          %v390 = vlaneseq
          %v391 = vshrl.u32 %v390, 7
          %v392 = vsub.s32 0, %v391
          %v393 = vrot.slane %v388, %v392
          %v396 = vsel %vm289, %v384, 0
          %v399 = vsel %vm289, %v385, 0
          %v402 = vsel %vm289, %v386, 0
          %404 = vmatprep.subr.mxu0 0.0
          %405 = vmatpush1.xpose.msra.mxu0 %v396
          %406 = vmatprep.subr.mxu0 0.0
          %407 = vmatpush1.xpose.msra.mxu0 %v399
          %408 = vmatprep.subr.mxu0 0.0
          %409 = vmatpush1.xpose.msra.mxu0 %v402
          %410 = vmatprep.subr.mxu0 0.0
          %411 = vmatpush1.xpose.msra.mxu0 0.0
          %412 = vmatprep.subr.mxu0 0.0
          %413 = vmatpush1.xpose.msra.mxu0 0.0
          %414 = vmatprep.subr.mxu0 0.0
          %415 = vmatpush1.xpose.msra.mxu0 0.0
          %416 = vmatprep.subr.mxu0 0.0
          %417 = vmatpush1.xpose.msra.mxu0 0.0
          %418 = vmatprep.subr.mxu0 0.0
          %419 = vmatpush1.xpose.msra.mxu0 0.0
          %420 = vmatprep.subr.mxu0 0.0
          %421 = vmatpush1.xpose.msra.mxu0 0.0
          %422 = vmatprep.subr.mxu0 0.0
          %423 = vmatpush1.xpose.msra.mxu0 0.0
          %424 = vmatprep.subr.mxu0 0.0
          %425 = vmatpush1.xpose.msra.mxu0 0.0
          %426 = vmatprep.subr.mxu0 0.0
          %427 = vmatpush1.xpose.msra.mxu0 0.0
          %428 = vmatprep.subr.mxu0 0.0
          %429 = vmatpush1.xpose.msra.mxu0 0.0
          %430 = vmatprep.subr.mxu0 0.0
          %431 = vmatpush1.xpose.msra.mxu0 0.0
          %432 = vmatprep.subr.mxu0 0.0
          %433 = vmatpush1.xpose.msra.mxu0 0.0
          %434 = vmatprep.subr.mxu0 0.0
          %435 = vmatpush1.xpose.msra.mxu0 0.0
          %436 = vmatprep.subr.mxu0 0.0
          %437 = vmatpush1.xpose.msra.mxu0 0.0
          %438 = vmatprep.subr.mxu0 0.0
          %439 = vmatpush1.xpose.msra.mxu0 0.0
          %440 = vmatprep.subr.mxu0 0.0
          %441 = vmatpush1.xpose.msra.mxu0 0.0
          %442 = vmatprep.subr.mxu0 0.0
          %443 = vmatpush1.xpose.msra.mxu0 0.0
          %444 = vmatprep.subr.mxu0 0.0
          %445 = vmatpush1.xpose.msra.mxu0 0.0
          %446 = vmatprep.subr.mxu0 0.0
          %447 = vmatpush1.xpose.msra.mxu0 0.0
          %448 = vmatprep.subr.mxu0 0.0
          %449 = vmatpush1.xpose.msra.mxu0 0.0
          %450 = vmatprep.subr.mxu0 0.0
          %451 = vmatpush1.xpose.msra.mxu0 0.0
          %452 = vmatprep.subr.mxu0 0.0
          %453 = vmatpush1.xpose.msra.mxu0 0.0
          %454 = vmatprep.subr.mxu0 0.0
          %455 = vmatpush1.xpose.msra.mxu0 0.0
          %456 = vmatprep.subr.mxu0 0.0
          %457 = vmatpush1.xpose.msra.mxu0 0.0
          %458 = vmatprep.subr.mxu0 0.0
          %459 = vmatpush1.xpose.msra.mxu0 0.0
          %460 = vmatprep.subr.mxu0 0.0
          %461 = vmatpush1.xpose.msra.mxu0 0.0
          %462 = vmatprep.subr.mxu0 0.0
          %463 = vmatpush1.xpose.msra.mxu0 0.0
          %464 = vmatprep.subr.mxu0 0.0
          %465 = vmatpush1.xpose.msra.mxu0 0.0
          %466 = vmatprep.subr.mxu0 0.0
          %467 = vmatpush1.xpose.msra.mxu0 0.0
          %468 = vmatprep.mubr.f32.mxu0 0.0
          %469 = vmatmul.mubr.f32.gmra.mrb[0].mxu0 %v291
          %v470 = vpop.f32.mrb[0].mxu0
          %v471 = vadd.f32 %v393, %v470
          %v472 = vpop.f32.mrb[0].mxu0
          %473 = vdwg.mxu0
          %s474 = scalar_lea.vmem [#allocation2], 8
          %475 = vst.msk [vmem:[%s474] sm:$0xff] %vm372, %v471
          %477 = vrot.lane.b32.xlu0 %v471, 120
          %v478 = vpop.permute.xlu0 %477
          %s480 = scalar_lea.vmem [#allocation3], 8
          %481 = vst.msk [vmem:[%s480] sm:$0xff] %vm372, %v478
          %482 = vrot.lane.b32.xlu0 %v471, 112
          %v483 = vpop.permute.xlu0 %482
          %s485 = scalar_lea.vmem [#allocation4], 8
          %486 = vst.msk [vmem:[%s485] sm:$0xff] %vm372, %v483
          %s487 = scalar_lea.vmem %s1, 48
          %v488 = vld [vmem:[%s487] sm:$0xff]
          %v489 = vld [vmem:[%s487 + $0x8] sm:$0xff]
          %v490 = vld [vmem:[%s487 + $0x10] sm:$0xff]
          %s491 = scalar_lea.vmem %s2, 2
          %v492 = vld [vmem:[%s491] sm:$0x1]
          %v494 = vlaneseq
          %v495 = vshrl.u32 %v494, 7
          %v496 = vsub.s32 0, %v495
          %v497 = vrot.slane %v492, %v496
          %v500 = vsel %vm289, %v488, 0
          %v503 = vsel %vm289, %v489, 0
          %v506 = vsel %vm289, %v490, 0
          %508 = vmatprep.subr.mxu0 0.0
          %509 = vmatpush1.xpose.msra.mxu0 %v500
          %510 = vmatprep.subr.mxu0 0.0
          %511 = vmatpush1.xpose.msra.mxu0 %v503
          %512 = vmatprep.subr.mxu0 0.0
          %513 = vmatpush1.xpose.msra.mxu0 %v506
          %514 = vmatprep.subr.mxu0 0.0
          %515 = vmatpush1.xpose.msra.mxu0 0.0
          %516 = vmatprep.subr.mxu0 0.0
          %517 = vmatpush1.xpose.msra.mxu0 0.0
          %518 = vmatprep.subr.mxu0 0.0
          %519 = vmatpush1.xpose.msra.mxu0 0.0
          %520 = vmatprep.subr.mxu0 0.0
          %521 = vmatpush1.xpose.msra.mxu0 0.0
          %522 = vmatprep.subr.mxu0 0.0
          %523 = vmatpush1.xpose.msra.mxu0 0.0
          %524 = vmatprep.subr.mxu0 0.0
          %525 = vmatpush1.xpose.msra.mxu0 0.0
          %526 = vmatprep.subr.mxu0 0.0
          %527 = vmatpush1.xpose.msra.mxu0 0.0
          %528 = vmatprep.subr.mxu0 0.0
          %529 = vmatpush1.xpose.msra.mxu0 0.0
          %530 = vmatprep.subr.mxu0 0.0
          %531 = vmatpush1.xpose.msra.mxu0 0.0
          %532 = vmatprep.subr.mxu0 0.0
          %533 = vmatpush1.xpose.msra.mxu0 0.0
          %534 = vmatprep.subr.mxu0 0.0
          %535 = vmatpush1.xpose.msra.mxu0 0.0
          %536 = vmatprep.subr.mxu0 0.0
          %537 = vmatpush1.xpose.msra.mxu0 0.0
          %538 = vmatprep.subr.mxu0 0.0
          %539 = vmatpush1.xpose.msra.mxu0 0.0
          %540 = vmatprep.subr.mxu0 0.0
          %541 = vmatpush1.xpose.msra.mxu0 0.0
          %542 = vmatprep.subr.mxu0 0.0
          %543 = vmatpush1.xpose.msra.mxu0 0.0
          %544 = vmatprep.subr.mxu0 0.0
          %545 = vmatpush1.xpose.msra.mxu0 0.0
          %546 = vmatprep.subr.mxu0 0.0
          %547 = vmatpush1.xpose.msra.mxu0 0.0
          %548 = vmatprep.subr.mxu0 0.0
          %549 = vmatpush1.xpose.msra.mxu0 0.0
          %550 = vmatprep.subr.mxu0 0.0
          %551 = vmatpush1.xpose.msra.mxu0 0.0
          %552 = vmatprep.subr.mxu0 0.0
          %553 = vmatpush1.xpose.msra.mxu0 0.0
          %554 = vmatprep.subr.mxu0 0.0
          %555 = vmatpush1.xpose.msra.mxu0 0.0
          %556 = vmatprep.subr.mxu0 0.0
          %557 = vmatpush1.xpose.msra.mxu0 0.0
          %558 = vmatprep.subr.mxu0 0.0
          %559 = vmatpush1.xpose.msra.mxu0 0.0
          %560 = vmatprep.subr.mxu0 0.0
          %561 = vmatpush1.xpose.msra.mxu0 0.0
          %562 = vmatprep.subr.mxu0 0.0
          %563 = vmatpush1.xpose.msra.mxu0 0.0
          %564 = vmatprep.subr.mxu0 0.0
          %565 = vmatpush1.xpose.msra.mxu0 0.0
          %566 = vmatprep.subr.mxu0 0.0
          %567 = vmatpush1.xpose.msra.mxu0 0.0
          %568 = vmatprep.subr.mxu0 0.0
          %569 = vmatpush1.xpose.msra.mxu0 0.0
          %570 = vmatprep.subr.mxu0 0.0
          %571 = vmatpush1.xpose.msra.mxu0 0.0
          %572 = vmatprep.mubr.f32.mxu0 0.0
          %573 = vmatmul.mubr.f32.gmra.mrb[0].mxu0 %v291
          %v574 = vpop.f32.mrb[0].mxu0
          %v575 = vadd.f32 %v497, %v574
          %v576 = vpop.f32.mrb[0].mxu0
          %577 = vdwg.mxu0
          %s578 = scalar_lea.vmem [#allocation2], 16
          %579 = vst.msk [vmem:[%s578] sm:$0xff] %vm372, %v575
          %581 = vrot.lane.b32.xlu0 %v575, 120
          %v582 = vpop.permute.xlu0 %581
          %s584 = scalar_lea.vmem [#allocation3], 16
          %585 = vst.msk [vmem:[%s584] sm:$0xff] %vm372, %v582
          %586 = vrot.lane.b32.xlu0 %v575, 112
          %v587 = vpop.permute.xlu0 %586
          %s589 = scalar_lea.vmem [#allocation4], 16
          %590 = vst.msk [vmem:[%s589] sm:$0xff] %vm372, %v587
          %s591 = scalar_lea.vmem %s1, 72
          %v592 = vld [vmem:[%s591] sm:$0xff]
          %v593 = vld [vmem:[%s591 + $0x8] sm:$0xff]
          %v594 = vld [vmem:[%s591 + $0x10] sm:$0xff]
          %s595 = scalar_lea.vmem %s2, 3
          %v596 = vld [vmem:[%s595] sm:$0x1]
          %v598 = vlaneseq
          %v599 = vshrl.u32 %v598, 7
          %v600 = vsub.s32 0, %v599
          %v601 = vrot.slane %v596, %v600
          %v604 = vsel %vm289, %v592, 0
          %v607 = vsel %vm289, %v593, 0
          %v610 = vsel %vm289, %v594, 0
          %612 = vmatprep.subr.mxu0 0.0
          %613 = vmatpush1.xpose.msra.mxu0 %v604
          %614 = vmatprep.subr.mxu0 0.0
          %615 = vmatpush1.xpose.msra.mxu0 %v607
          %616 = vmatprep.subr.mxu0 0.0
          %617 = vmatpush1.xpose.msra.mxu0 %v610
          %618 = vmatprep.subr.mxu0 0.0
          %619 = vmatpush1.xpose.msra.mxu0 0.0
          %620 = vmatprep.subr.mxu0 0.0
          %621 = vmatpush1.xpose.msra.mxu0 0.0
          %622 = vmatprep.subr.mxu0 0.0
          %623 = vmatpush1.xpose.msra.mxu0 0.0
          %624 = vmatprep.subr.mxu0 0.0
          %625 = vmatpush1.xpose.msra.mxu0 0.0
          %626 = vmatprep.subr.mxu0 0.0
          %627 = vmatpush1.xpose.msra.mxu0 0.0
          %628 = vmatprep.subr.mxu0 0.0
          %629 = vmatpush1.xpose.msra.mxu0 0.0
          %630 = vmatprep.subr.mxu0 0.0
          %631 = vmatpush1.xpose.msra.mxu0 0.0
          %632 = vmatprep.subr.mxu0 0.0
          %633 = vmatpush1.xpose.msra.mxu0 0.0
          %634 = vmatprep.subr.mxu0 0.0
          %635 = vmatpush1.xpose.msra.mxu0 0.0
          %636 = vmatprep.subr.mxu0 0.0
          %637 = vmatpush1.xpose.msra.mxu0 0.0
          %638 = vmatprep.subr.mxu0 0.0
          %639 = vmatpush1.xpose.msra.mxu0 0.0
          %640 = vmatprep.subr.mxu0 0.0
          %641 = vmatpush1.xpose.msra.mxu0 0.0
          %642 = vmatprep.subr.mxu0 0.0
          %643 = vmatpush1.xpose.msra.mxu0 0.0
          %644 = vmatprep.subr.mxu0 0.0
          %645 = vmatpush1.xpose.msra.mxu0 0.0
          %646 = vmatprep.subr.mxu0 0.0
          %647 = vmatpush1.xpose.msra.mxu0 0.0
          %648 = vmatprep.subr.mxu0 0.0
          %649 = vmatpush1.xpose.msra.mxu0 0.0
          %650 = vmatprep.subr.mxu0 0.0
          %651 = vmatpush1.xpose.msra.mxu0 0.0
          %652 = vmatprep.subr.mxu0 0.0
          %653 = vmatpush1.xpose.msra.mxu0 0.0
          %654 = vmatprep.subr.mxu0 0.0
          %655 = vmatpush1.xpose.msra.mxu0 0.0
          %656 = vmatprep.subr.mxu0 0.0
          %657 = vmatpush1.xpose.msra.mxu0 0.0
          %658 = vmatprep.subr.mxu0 0.0
          %659 = vmatpush1.xpose.msra.mxu0 0.0
          %660 = vmatprep.subr.mxu0 0.0
          %661 = vmatpush1.xpose.msra.mxu0 0.0
          %662 = vmatprep.subr.mxu0 0.0
          %663 = vmatpush1.xpose.msra.mxu0 0.0
          %664 = vmatprep.subr.mxu0 0.0
          %665 = vmatpush1.xpose.msra.mxu0 0.0
          %666 = vmatprep.subr.mxu0 0.0
          %667 = vmatpush1.xpose.msra.mxu0 0.0
          %668 = vmatprep.subr.mxu0 0.0
          %669 = vmatpush1.xpose.msra.mxu0 0.0
          %670 = vmatprep.subr.mxu0 0.0
          %671 = vmatpush1.xpose.msra.mxu0 0.0
          %672 = vmatprep.subr.mxu0 0.0
          %673 = vmatpush1.xpose.msra.mxu0 0.0
          %674 = vmatprep.subr.mxu0 0.0
          %675 = vmatpush1.xpose.msra.mxu0 0.0
          %676 = vmatprep.mubr.f32.mxu0 0.0
          %677 = vmatmul.mubr.f32.gmra.mrb[0].mxu0 %v291
          %v678 = vpop.f32.mrb[0].mxu0
          %v679 = vadd.f32 %v601, %v678
          %v680 = vpop.f32.mrb[0].mxu0
          %681 = vdwg.mxu0
          %s682 = scalar_lea.vmem [#allocation2], 24
          %683 = vst.msk [vmem:[%s682] sm:$0xff] %vm372, %v679
          %685 = vrot.lane.b32.xlu0 %v679, 120
          %v686 = vpop.permute.xlu0 %685
          %s688 = scalar_lea.vmem [#allocation3], 24
          %689 = vst.msk [vmem:[%s688] sm:$0xff] %vm372, %v686
          %690 = vrot.lane.b32.xlu0 %v679, 112
          %v691 = vpop.permute.xlu0 %690
          %s693 = scalar_lea.vmem [#allocation4], 24
          %694 = vst.msk [vmem:[%s693] sm:$0xff] %vm372, %v691
        $region44: #{tpu_custom_call.1} parent=39 // pred_fallthru
          _
        %s695 = smul.u32 %s29, 8
        %s696 = scalar_lea.vmem [#allocation2], %s695
        %v697 = vld [vmem:[%s696] sm:$0xff]
        %v698 = vld [vmem:[#allocation3] sm:$0xff]
        %v699 = vld [vmem:[#allocation4] sm:$0xff]
        %vm700 = vcmask 64512
        %v702 = vsel %vm700, %v697, 0
        %v705 = vsel %vm700, %v698, 0
        %707 = vmatprep.subr.mxu0 0.0
        %708 = vmatpush1.xpose.msra.mxu0 %v705
        %709 = vmatprep.subr.mxu0 0.0
        %710 = vmatpush1.xpose.msra.mxu0 0.0
        %711 = vmatprep.subr.mxu0 0.0
        %712 = vmatpush1.xpose.msra.mxu0 0.0
        %713 = vmatprep.subr.mxu0 0.0
        %714 = vmatpush1.xpose.msra.mxu0 0.0
        %715 = vmatprep.subr.mxu0 0.0
        %716 = vmatpush1.xpose.msra.mxu0 0.0
        %717 = vmatprep.subr.mxu0 0.0
        %718 = vmatpush1.xpose.msra.mxu0 0.0
        %719 = vmatprep.subr.mxu0 0.0
        %720 = vmatpush1.xpose.msra.mxu0 0.0
        %721 = vmatprep.subr.mxu0 0.0
        %722 = vmatpush1.xpose.msra.mxu0 0.0
        %723 = vmatprep.subr.mxu0 0.0
        %724 = vmatpush1.xpose.msra.mxu0 0.0
        %725 = vmatprep.subr.mxu0 0.0
        %726 = vmatpush1.xpose.msra.mxu0 0.0
        %727 = vmatprep.subr.mxu0 0.0
        %728 = vmatpush1.xpose.msra.mxu0 0.0
        %729 = vmatprep.subr.mxu0 0.0
        %730 = vmatpush1.xpose.msra.mxu0 0.0
        %731 = vmatprep.subr.mxu0 0.0
        %732 = vmatpush1.xpose.msra.mxu0 0.0
        %733 = vmatprep.subr.mxu0 0.0
        %734 = vmatpush1.xpose.msra.mxu0 0.0
        %735 = vmatprep.subr.mxu0 0.0
        %736 = vmatpush1.xpose.msra.mxu0 0.0
        %737 = vmatprep.subr.mxu0 0.0
        %738 = vmatpush1.xpose.msra.mxu0 0.0
        %739 = vmatprep.subr.mxu0 0.0
        %740 = vmatpush1.xpose.msra.mxu0 0.0
        %741 = vmatprep.subr.mxu0 0.0
        %742 = vmatpush1.xpose.msra.mxu0 0.0
        %743 = vmatprep.subr.mxu0 0.0
        %744 = vmatpush1.xpose.msra.mxu0 0.0
        %745 = vmatprep.subr.mxu0 0.0
        %746 = vmatpush1.xpose.msra.mxu0 0.0
        %747 = vmatprep.subr.mxu0 0.0
        %748 = vmatpush1.xpose.msra.mxu0 0.0
        %749 = vmatprep.subr.mxu0 0.0
        %750 = vmatpush1.xpose.msra.mxu0 0.0
        %751 = vmatprep.subr.mxu0 0.0
        %752 = vmatpush1.xpose.msra.mxu0 0.0
        %753 = vmatprep.subr.mxu0 0.0
        %754 = vmatpush1.xpose.msra.mxu0 0.0
        %755 = vmatprep.subr.mxu0 0.0
        %756 = vmatpush1.xpose.msra.mxu0 0.0
        %757 = vmatprep.subr.mxu0 0.0
        %758 = vmatpush1.xpose.msra.mxu0 0.0
        %759 = vmatprep.subr.mxu0 0.0
        %760 = vmatpush1.xpose.msra.mxu0 0.0
        %761 = vmatprep.subr.mxu0 0.0
        %762 = vmatpush1.xpose.msra.mxu0 0.0
        %763 = vmatprep.subr.mxu0 0.0
        %764 = vmatpush1.xpose.msra.mxu0 0.0
        %765 = vmatprep.subr.mxu0 0.0
        %766 = vmatpush1.xpose.msra.mxu0 0.0
        %767 = vmatprep.subr.mxu0 0.0
        %768 = vmatpush1.xpose.msra.mxu0 0.0
        %769 = vmatprep.subr.mxu0 0.0
        %770 = vmatpush1.xpose.msra.mxu0 0.0
        %771 = vmatprep.mubr.f32.mxu0 0.0
        %772 = vmatmul.mubr.f32.gmra.mrb[0].mxu0 %v702
        %v773 = vpop.f32.mrb[0].mxu0
        %v774 = vadd.f32 0.0, %v773
        %v775 = vpop.f32.mrb[0].mxu0
        %776 = vdwg.mxu0
        %v777 = vsel %vm700, %v774, -inf
        %778 = vmax.xlane.f32.xlu0 %v777
        %v779 = vpop.xlane.xlu0 %778
        %v780 = vsub.f32 %v774, %v779
        %v781 = vmul.f32 %v780, 1.442695
        %v782 = vpow.pop %v781
        %v783 = vsel %vm700, %v782, 0.0
        %784 = vadd.xlane.f32.xlu0 %v783
        %v785 = vpop.xlane.xlu0 %784
        %v786 = vrcp.pop %v785
        %v787 = vmul.f32 %v782, %v786
        %788 = vst.msk [vmem:[%s269] sm:$0xff] %vm700, %v787
        %v790 = vsel %vm700, %v787, 0
        %792 = vmatprep.subr.mxu0 0.0
        %793 = vmatpush1.msra.mxu0 %v699
        %794 = vmatprep.subr.mxu0 0.0
        %795 = vmatpush1.msra.mxu0 0.0
        %796 = vmatprep.subr.mxu0 0.0
        %797 = vmatpush1.msra.mxu0 0.0
        %798 = vmatprep.subr.mxu0 0.0
        %799 = vmatpush1.msra.mxu0 0.0
        %800 = vmatprep.subr.mxu0 0.0
        %801 = vmatpush1.msra.mxu0 0.0
        %802 = vmatprep.subr.mxu0 0.0
        %803 = vmatpush1.msra.mxu0 0.0
        %804 = vmatprep.subr.mxu0 0.0
        %805 = vmatpush1.msra.mxu0 0.0
        %806 = vmatprep.subr.mxu0 0.0
        %807 = vmatpush1.msra.mxu0 0.0
        %808 = vmatprep.subr.mxu0 0.0
        %809 = vmatpush1.msra.mxu0 0.0
        %810 = vmatprep.subr.mxu0 0.0
        %811 = vmatpush1.msra.mxu0 0.0
        %812 = vmatprep.subr.mxu0 0.0
        %813 = vmatpush1.msra.mxu0 0.0
        %814 = vmatprep.subr.mxu0 0.0
        %815 = vmatpush1.msra.mxu0 0.0
        %816 = vmatprep.subr.mxu0 0.0
        %817 = vmatpush1.msra.mxu0 0.0
        %818 = vmatprep.subr.mxu0 0.0
        %819 = vmatpush1.msra.mxu0 0.0
        %820 = vmatprep.subr.mxu0 0.0
        %821 = vmatpush1.msra.mxu0 0.0
        %822 = vmatprep.subr.mxu0 0.0
        %823 = vmatpush1.msra.mxu0 0.0
        %824 = vmatprep.subr.mxu0 0.0
        %825 = vmatpush1.msra.mxu0 0.0
        %826 = vmatprep.subr.mxu0 0.0
        %827 = vmatpush1.msra.mxu0 0.0
        %828 = vmatprep.subr.mxu0 0.0
        %829 = vmatpush1.msra.mxu0 0.0
        %830 = vmatprep.subr.mxu0 0.0
        %831 = vmatpush1.msra.mxu0 0.0
        %832 = vmatprep.subr.mxu0 0.0
        %833 = vmatpush1.msra.mxu0 0.0
        %834 = vmatprep.subr.mxu0 0.0
        %835 = vmatpush1.msra.mxu0 0.0
        %836 = vmatprep.subr.mxu0 0.0
        %837 = vmatpush1.msra.mxu0 0.0
        %838 = vmatprep.subr.mxu0 0.0
        %839 = vmatpush1.msra.mxu0 0.0
        %840 = vmatprep.subr.mxu0 0.0
        %841 = vmatpush1.msra.mxu0 0.0
        %842 = vmatprep.subr.mxu0 0.0
        %843 = vmatpush1.msra.mxu0 0.0
        %844 = vmatprep.subr.mxu0 0.0
        %845 = vmatpush1.msra.mxu0 0.0
        %846 = vmatprep.subr.mxu0 0.0
        %847 = vmatpush1.msra.mxu0 0.0
        %848 = vmatprep.subr.mxu0 0.0
        %849 = vmatpush1.msra.mxu0 0.0
        %850 = vmatprep.subr.mxu0 0.0
        %851 = vmatpush1.msra.mxu0 0.0
        %852 = vmatprep.subr.mxu0 0.0
        %853 = vmatpush1.msra.mxu0 0.0
        %854 = vmatprep.subr.mxu0 0.0
        %855 = vmatpush1.msra.mxu0 0.0
        %856 = vmatprep.mubr.f32.mxu0 0.0
        %857 = vmatmul.mubr.f32.gmra.mrb[0].mxu0 %v790
        %v858 = vpop.f32.mrb[0].mxu0
        %v859 = vadd.f32 0.0, %v858
        %v860 = vpop.f32.mrb[0].mxu0
        %861 = vdwg.mxu0
        %v862 = vld [vmem:[%s3] sm:$0xff]
        %v863 = vld [vmem:[%s3 + $0x8] sm:$0xff]
        %v864 = vld [vmem:[%s3 + $0x10] sm:$0xff]
        %v865 = vld [vmem:[%s3 + $0x18] sm:$0xff]
        %s866 = sadd.s32 %s695, 8
        %s867 = scalar_lea.vmem [#allocation2], %s866
        %v868 = vld [vmem:[%s867] sm:$0xff]
        %s869 = scalar_lea.vmem [#allocation3], 8
        %v870 = vld [vmem:[%s869] sm:$0xff]
        %s871 = scalar_lea.vmem [#allocation4], 8
        %v872 = vld [vmem:[%s871] sm:$0xff]
        %v874 = vsel %vm700, %v868, 0
        %v877 = vsel %vm700, %v870, 0
        %879 = vmatprep.subr.mxu0 0.0
        %880 = vmatpush1.xpose.msra.mxu0 %v877
        %881 = vmatprep.subr.mxu0 0.0
        %882 = vmatpush1.xpose.msra.mxu0 0.0
        %883 = vmatprep.subr.mxu0 0.0
        %884 = vmatpush1.xpose.msra.mxu0 0.0
        %885 = vmatprep.subr.mxu0 0.0
        %886 = vmatpush1.xpose.msra.mxu0 0.0
        %887 = vmatprep.subr.mxu0 0.0
        %888 = vmatpush1.xpose.msra.mxu0 0.0
        %889 = vmatprep.subr.mxu0 0.0
        %890 = vmatpush1.xpose.msra.mxu0 0.0
        %891 = vmatprep.subr.mxu0 0.0
        %892 = vmatpush1.xpose.msra.mxu0 0.0
        %893 = vmatprep.subr.mxu0 0.0
        %894 = vmatpush1.xpose.msra.mxu0 0.0
        %895 = vmatprep.subr.mxu0 0.0
        %896 = vmatpush1.xpose.msra.mxu0 0.0
        %897 = vmatprep.subr.mxu0 0.0
        %898 = vmatpush1.xpose.msra.mxu0 0.0
        %899 = vmatprep.subr.mxu0 0.0
        %900 = vmatpush1.xpose.msra.mxu0 0.0
        %901 = vmatprep.subr.mxu0 0.0
        %902 = vmatpush1.xpose.msra.mxu0 0.0
        %903 = vmatprep.subr.mxu0 0.0
        %904 = vmatpush1.xpose.msra.mxu0 0.0
        %905 = vmatprep.subr.mxu0 0.0
        %906 = vmatpush1.xpose.msra.mxu0 0.0
        %907 = vmatprep.subr.mxu0 0.0
        %908 = vmatpush1.xpose.msra.mxu0 0.0
        %909 = vmatprep.subr.mxu0 0.0
        %910 = vmatpush1.xpose.msra.mxu0 0.0
        %911 = vmatprep.subr.mxu0 0.0
        %912 = vmatpush1.xpose.msra.mxu0 0.0
        %913 = vmatprep.subr.mxu0 0.0
        %914 = vmatpush1.xpose.msra.mxu0 0.0
        %915 = vmatprep.subr.mxu0 0.0
        %916 = vmatpush1.xpose.msra.mxu0 0.0
        %917 = vmatprep.subr.mxu0 0.0
        %918 = vmatpush1.xpose.msra.mxu0 0.0
        %919 = vmatprep.subr.mxu0 0.0
        %920 = vmatpush1.xpose.msra.mxu0 0.0
        %921 = vmatprep.subr.mxu0 0.0
        %922 = vmatpush1.xpose.msra.mxu0 0.0
        %923 = vmatprep.subr.mxu0 0.0
        %924 = vmatpush1.xpose.msra.mxu0 0.0
        %925 = vmatprep.subr.mxu0 0.0
        %926 = vmatpush1.xpose.msra.mxu0 0.0
        %927 = vmatprep.subr.mxu0 0.0
        %928 = vmatpush1.xpose.msra.mxu0 0.0
        %929 = vmatprep.subr.mxu0 0.0
        %930 = vmatpush1.xpose.msra.mxu0 0.0
        %931 = vmatprep.subr.mxu0 0.0
        %932 = vmatpush1.xpose.msra.mxu0 0.0
        %933 = vmatprep.subr.mxu0 0.0
        %934 = vmatpush1.xpose.msra.mxu0 0.0
        %935 = vmatprep.subr.mxu0 0.0
        %936 = vmatpush1.xpose.msra.mxu0 0.0
        %937 = vmatprep.subr.mxu0 0.0
        %938 = vmatpush1.xpose.msra.mxu0 0.0
        %939 = vmatprep.subr.mxu0 0.0
        %940 = vmatpush1.xpose.msra.mxu0 0.0
        %941 = vmatprep.subr.mxu0 0.0
        %942 = vmatpush1.xpose.msra.mxu0 0.0
        %943 = vmatprep.mubr.f32.mxu0 0.0
        %944 = vmatmul.mubr.f32.gmra.mrb[0].mxu0 %v874
        %v945 = vpop.f32.mrb[0].mxu0
        %v946 = vadd.f32 0.0, %v945
        %v947 = vpop.f32.mrb[0].mxu0
        %948 = vdwg.mxu0
        %v949 = vsel %vm700, %v946, -inf
        %950 = vmax.xlane.f32.xlu0 %v949
        %v951 = vpop.xlane.xlu0 %950
        %v952 = vsub.f32 %v946, %v951
        %v953 = vmul.f32 %v952, 1.442695
        %v954 = vpow.pop %v953
        %v955 = vsel %vm700, %v954, 0.0
        %956 = vadd.xlane.f32.xlu0 %v955
        %v957 = vpop.xlane.xlu0 %956
        %v958 = vrcp.pop %v957
        %v959 = vmul.f32 %v954, %v958
        %s960 = scalar_lea.vmem %s269, 8 [#allocation7]
        %961 = vst.msk [vmem:[%s960] sm:$0xff] %vm700, %v959
        %v963 = vsel %vm700, %v959, 0
        %965 = vmatprep.subr.mxu0 0.0
        %966 = vmatpush1.msra.mxu0 %v872
        %967 = vmatprep.subr.mxu0 0.0
        %968 = vmatpush1.msra.mxu0 0.0
        %969 = vmatprep.subr.mxu0 0.0
        %970 = vmatpush1.msra.mxu0 0.0
        %971 = vmatprep.subr.mxu0 0.0
        %972 = vmatpush1.msra.mxu0 0.0
        %973 = vmatprep.subr.mxu0 0.0
        %974 = vmatpush1.msra.mxu0 0.0
        %975 = vmatprep.subr.mxu0 0.0
        %976 = vmatpush1.msra.mxu0 0.0
        %977 = vmatprep.subr.mxu0 0.0
        %978 = vmatpush1.msra.mxu0 0.0
        %979 = vmatprep.subr.mxu0 0.0
        %980 = vmatpush1.msra.mxu0 0.0
        %981 = vmatprep.subr.mxu0 0.0
        %982 = vmatpush1.msra.mxu0 0.0
        %983 = vmatprep.subr.mxu0 0.0
        %984 = vmatpush1.msra.mxu0 0.0
        %985 = vmatprep.subr.mxu0 0.0
        %986 = vmatpush1.msra.mxu0 0.0
        %987 = vmatprep.subr.mxu0 0.0
        %988 = vmatpush1.msra.mxu0 0.0
        %989 = vmatprep.subr.mxu0 0.0
        %990 = vmatpush1.msra.mxu0 0.0
        %991 = vmatprep.subr.mxu0 0.0
        %992 = vmatpush1.msra.mxu0 0.0
        %993 = vmatprep.subr.mxu0 0.0
        %994 = vmatpush1.msra.mxu0 0.0
        %995 = vmatprep.subr.mxu0 0.0
        %996 = vmatpush1.msra.mxu0 0.0
        %997 = vmatprep.subr.mxu0 0.0
        %998 = vmatpush1.msra.mxu0 0.0
        %999 = vmatprep.subr.mxu0 0.0
        %1000 = vmatpush1.msra.mxu0 0.0
        %1001 = vmatprep.subr.mxu0 0.0
        %1002 = vmatpush1.msra.mxu0 0.0
        %1003 = vmatprep.subr.mxu0 0.0
        %1004 = vmatpush1.msra.mxu0 0.0
        %1005 = vmatprep.subr.mxu0 0.0
        %1006 = vmatpush1.msra.mxu0 0.0
        %1007 = vmatprep.subr.mxu0 0.0
        %1008 = vmatpush1.msra.mxu0 0.0
        %1009 = vmatprep.subr.mxu0 0.0
        %1010 = vmatpush1.msra.mxu0 0.0
        %1011 = vmatprep.subr.mxu0 0.0
        %1012 = vmatpush1.msra.mxu0 0.0
        %1013 = vmatprep.subr.mxu0 0.0
        %1014 = vmatpush1.msra.mxu0 0.0
        %1015 = vmatprep.subr.mxu0 0.0
        %1016 = vmatpush1.msra.mxu0 0.0
        %1017 = vmatprep.subr.mxu0 0.0
        %1018 = vmatpush1.msra.mxu0 0.0
        %1019 = vmatprep.subr.mxu0 0.0
        %1020 = vmatpush1.msra.mxu0 0.0
        %1021 = vmatprep.subr.mxu0 0.0
        %1022 = vmatpush1.msra.mxu0 0.0
        %1023 = vmatprep.subr.mxu0 0.0
        %1024 = vmatpush1.msra.mxu0 0.0
        %1025 = vmatprep.subr.mxu0 0.0
        %1026 = vmatpush1.msra.mxu0 0.0
        %1027 = vmatprep.subr.mxu0 0.0
        %1028 = vmatpush1.msra.mxu0 0.0
        %1029 = vmatprep.mubr.f32.mxu0 0.0
        %1030 = vmatmul.mubr.f32.gmra.mrb[0].mxu0 %v963
        %v1031 = vpop.f32.mrb[0].mxu0
        %v1032 = vadd.f32 0.0, %v1031
        %v1033 = vpop.f32.mrb[0].mxu0
        %1034 = vdwg.mxu0
        %s1035 = scalar_lea.vmem %s3, 32
        %v1036 = vld [vmem:[%s1035] sm:$0xff]
        %v1037 = vld [vmem:[%s1035 + $0x8] sm:$0xff]
        %v1038 = vld [vmem:[%s1035 + $0x10] sm:$0xff]
        %v1039 = vld [vmem:[%s1035 + $0x18] sm:$0xff]
        %v1041 = vsel %vm700, %v1032, 0
        %v1044 = vsel %vm700, %v1036, 0
        %v1047 = vsel %vm700, %v1037, 0
        %v1050 = vsel %vm700, %v1038, 0
        %v1053 = vsel %vm700, %v1039, 0
        %1055 = vmatprep.subr.mxu0 0.0
        %1056 = vmatpush1.xpose.msra.mxu0 %v1044
        %1057 = vmatprep.subr.mxu0 0.0
        %1058 = vmatpush1.xpose.msra.mxu0 %v1047
        %1059 = vmatprep.subr.mxu0 0.0
        %1060 = vmatpush1.xpose.msra.mxu0 %v1050
        %1061 = vmatprep.subr.mxu0 0.0
        %1062 = vmatpush1.xpose.msra.mxu0 %v1053
        %1063 = vmatprep.subr.mxu0 0.0
        %1064 = vmatpush1.xpose.msra.mxu0 0.0
        %1065 = vmatprep.subr.mxu0 0.0
        %1066 = vmatpush1.xpose.msra.mxu0 0.0
        %1067 = vmatprep.subr.mxu0 0.0
        %1068 = vmatpush1.xpose.msra.mxu0 0.0
        %1069 = vmatprep.subr.mxu0 0.0
        %1070 = vmatpush1.xpose.msra.mxu0 0.0
        %1071 = vmatprep.subr.mxu0 0.0
        %1072 = vmatpush1.xpose.msra.mxu0 0.0
        %1073 = vmatprep.subr.mxu0 0.0
        %1074 = vmatpush1.xpose.msra.mxu0 0.0
        %1075 = vmatprep.subr.mxu0 0.0
        %1076 = vmatpush1.xpose.msra.mxu0 0.0
        %1077 = vmatprep.subr.mxu0 0.0
        %1078 = vmatpush1.xpose.msra.mxu0 0.0
        %1079 = vmatprep.subr.mxu0 0.0
        %1080 = vmatpush1.xpose.msra.mxu0 0.0
        %1081 = vmatprep.subr.mxu0 0.0
        %1082 = vmatpush1.xpose.msra.mxu0 0.0
        %1083 = vmatprep.subr.mxu0 0.0
        %1084 = vmatpush1.xpose.msra.mxu0 0.0
        %1085 = vmatprep.subr.mxu0 0.0
        %1086 = vmatpush1.xpose.msra.mxu0 0.0
        %1087 = vmatprep.subr.mxu0 0.0
        %1088 = vmatpush1.xpose.msra.mxu0 0.0
        %1089 = vmatprep.subr.mxu0 0.0
        %1090 = vmatpush1.xpose.msra.mxu0 0.0
        %1091 = vmatprep.subr.mxu0 0.0
        %1092 = vmatpush1.xpose.msra.mxu0 0.0
        %1093 = vmatprep.subr.mxu0 0.0
        %1094 = vmatpush1.xpose.msra.mxu0 0.0
        %1095 = vmatprep.subr.mxu0 0.0
        %1096 = vmatpush1.xpose.msra.mxu0 0.0
        %1097 = vmatprep.subr.mxu0 0.0
        %1098 = vmatpush1.xpose.msra.mxu0 0.0
        %1099 = vmatprep.subr.mxu0 0.0
        %1100 = vmatpush1.xpose.msra.mxu0 0.0
        %1101 = vmatprep.subr.mxu0 0.0
        %1102 = vmatpush1.xpose.msra.mxu0 0.0
        %1103 = vmatprep.subr.mxu0 0.0
        %1104 = vmatpush1.xpose.msra.mxu0 0.0
        %1105 = vmatprep.subr.mxu0 0.0
        %1106 = vmatpush1.xpose.msra.mxu0 0.0
        %1107 = vmatprep.subr.mxu0 0.0
        %1108 = vmatpush1.xpose.msra.mxu0 0.0
        %1109 = vmatprep.subr.mxu0 0.0
        %1110 = vmatpush1.xpose.msra.mxu0 0.0
        %1111 = vmatprep.subr.mxu0 0.0
        %1112 = vmatpush1.xpose.msra.mxu0 0.0
        %1113 = vmatprep.subr.mxu0 0.0
        %1114 = vmatpush1.xpose.msra.mxu0 0.0
        %1115 = vmatprep.subr.mxu0 0.0
        %1116 = vmatpush1.xpose.msra.mxu0 0.0
        %1117 = vmatprep.subr.mxu0 0.0
        %1118 = vmatpush1.xpose.msra.mxu0 0.0
        %1119 = vmatprep.mubr.f32.mxu0 0.0
        %1120 = vmatmul.mubr.f32.gmra.mrb[0].mxu0 %v1041
        %v1121 = vpop.f32.mrb[0].mxu0
        %v1122 = vadd.f32 0.0, %v1121
        %v1123 = vpop.f32.mrb[0].mxu0
        %1124 = vdwg.mxu0
        %v1126 = vsel %vm700, %v859, 0
        %v1129 = vsel %vm700, %v862, 0
        %v1132 = vsel %vm700, %v863, 0
        %v1135 = vsel %vm700, %v864, 0
        %v1138 = vsel %vm700, %v865, 0
        %1140 = vmatprep.subr.mxu0 0.0
        %1141 = vmatpush1.xpose.msra.mxu0 %v1129
        %1142 = vmatprep.subr.mxu0 0.0
        %1143 = vmatpush1.xpose.msra.mxu0 %v1132
        %1144 = vmatprep.subr.mxu0 0.0
        %1145 = vmatpush1.xpose.msra.mxu0 %v1135
        %1146 = vmatprep.subr.mxu0 0.0
        %1147 = vmatpush1.xpose.msra.mxu0 %v1138
        %1148 = vmatprep.subr.mxu0 0.0
        %1149 = vmatpush1.xpose.msra.mxu0 0.0
        %1150 = vmatprep.subr.mxu0 0.0
        %1151 = vmatpush1.xpose.msra.mxu0 0.0
        %1152 = vmatprep.subr.mxu0 0.0
        %1153 = vmatpush1.xpose.msra.mxu0 0.0
        %1154 = vmatprep.subr.mxu0 0.0
        %1155 = vmatpush1.xpose.msra.mxu0 0.0
        %1156 = vmatprep.subr.mxu0 0.0
        %1157 = vmatpush1.xpose.msra.mxu0 0.0
        %1158 = vmatprep.subr.mxu0 0.0
        %1159 = vmatpush1.xpose.msra.mxu0 0.0
        %1160 = vmatprep.subr.mxu0 0.0
        %1161 = vmatpush1.xpose.msra.mxu0 0.0
        %1162 = vmatprep.subr.mxu0 0.0
        %1163 = vmatpush1.xpose.msra.mxu0 0.0
        %1164 = vmatprep.subr.mxu0 0.0
        %1165 = vmatpush1.xpose.msra.mxu0 0.0
        %1166 = vmatprep.subr.mxu0 0.0
        %1167 = vmatpush1.xpose.msra.mxu0 0.0
        %1168 = vmatprep.subr.mxu0 0.0
        %1169 = vmatpush1.xpose.msra.mxu0 0.0
        %1170 = vmatprep.subr.mxu0 0.0
        %1171 = vmatpush1.xpose.msra.mxu0 0.0
        %1172 = vmatprep.subr.mxu0 0.0
        %1173 = vmatpush1.xpose.msra.mxu0 0.0
        %1174 = vmatprep.subr.mxu0 0.0
        %1175 = vmatpush1.xpose.msra.mxu0 0.0
        %1176 = vmatprep.subr.mxu0 0.0
        %1177 = vmatpush1.xpose.msra.mxu0 0.0
        %1178 = vmatprep.subr.mxu0 0.0
        %1179 = vmatpush1.xpose.msra.mxu0 0.0
        %1180 = vmatprep.subr.mxu0 0.0
        %1181 = vmatpush1.xpose.msra.mxu0 0.0
        %1182 = vmatprep.subr.mxu0 0.0
        %1183 = vmatpush1.xpose.msra.mxu0 0.0
        %1184 = vmatprep.subr.mxu0 0.0
        %1185 = vmatpush1.xpose.msra.mxu0 0.0
        %1186 = vmatprep.subr.mxu0 0.0
        %1187 = vmatpush1.xpose.msra.mxu0 0.0
        %1188 = vmatprep.subr.mxu0 0.0
        %1189 = vmatpush1.xpose.msra.mxu0 0.0
        %1190 = vmatprep.subr.mxu0 0.0
        %1191 = vmatpush1.xpose.msra.mxu0 0.0
        %1192 = vmatprep.subr.mxu0 0.0
        %1193 = vmatpush1.xpose.msra.mxu0 0.0
        %1194 = vmatprep.subr.mxu0 0.0
        %1195 = vmatpush1.xpose.msra.mxu0 0.0
        %1196 = vmatprep.subr.mxu0 0.0
        %1197 = vmatpush1.xpose.msra.mxu0 0.0
        %1198 = vmatprep.subr.mxu0 0.0
        %1199 = vmatpush1.xpose.msra.mxu0 0.0
        %1200 = vmatprep.subr.mxu0 0.0
        %1201 = vmatpush1.xpose.msra.mxu0 0.0
        %1202 = vmatprep.subr.mxu0 0.0
        %1203 = vmatpush1.xpose.msra.mxu0 0.0
        %1204 = vmatprep.mubr.f32.mxu0 0.0
        %1205 = vmatmul.mubr.f32.gmra.mrb[0].mxu0 %v1126
        %v1206 = vpop.f32.mrb[0].mxu0
        %v1207 = vadd.f32 %v1122, %v1206
        %v1208 = vpop.f32.mrb[0].mxu0
        %1209 = vdwg.mxu0
        %s1210 = sadd.s32 %s695, 16
        %s1211 = scalar_lea.vmem [#allocation2], %s1210
        %v1212 = vld [vmem:[%s1211] sm:$0xff]
        %s1213 = scalar_lea.vmem [#allocation3], 16
        %v1214 = vld [vmem:[%s1213] sm:$0xff]
        %s1215 = scalar_lea.vmem [#allocation4], 16
        %v1216 = vld [vmem:[%s1215] sm:$0xff]
        %v1218 = vsel %vm700, %v1212, 0
        %v1221 = vsel %vm700, %v1214, 0
        %1223 = vmatprep.subr.mxu0 0.0
        %1224 = vmatpush1.xpose.msra.mxu0 %v1221
        %1225 = vmatprep.subr.mxu0 0.0
        %1226 = vmatpush1.xpose.msra.mxu0 0.0
        %1227 = vmatprep.subr.mxu0 0.0
        %1228 = vmatpush1.xpose.msra.mxu0 0.0
        %1229 = vmatprep.subr.mxu0 0.0
        %1230 = vmatpush1.xpose.msra.mxu0 0.0
        %1231 = vmatprep.subr.mxu0 0.0
        %1232 = vmatpush1.xpose.msra.mxu0 0.0
        %1233 = vmatprep.subr.mxu0 0.0
        %1234 = vmatpush1.xpose.msra.mxu0 0.0
        %1235 = vmatprep.subr.mxu0 0.0
        %1236 = vmatpush1.xpose.msra.mxu0 0.0
        %1237 = vmatprep.subr.mxu0 0.0
        %1238 = vmatpush1.xpose.msra.mxu0 0.0
        %1239 = vmatprep.subr.mxu0 0.0
        %1240 = vmatpush1.xpose.msra.mxu0 0.0
        %1241 = vmatprep.subr.mxu0 0.0
        %1242 = vmatpush1.xpose.msra.mxu0 0.0
        %1243 = vmatprep.subr.mxu0 0.0
        %1244 = vmatpush1.xpose.msra.mxu0 0.0
        %1245 = vmatprep.subr.mxu0 0.0
        %1246 = vmatpush1.xpose.msra.mxu0 0.0
        %1247 = vmatprep.subr.mxu0 0.0
        %1248 = vmatpush1.xpose.msra.mxu0 0.0
        %1249 = vmatprep.subr.mxu0 0.0
        %1250 = vmatpush1.xpose.msra.mxu0 0.0
        %1251 = vmatprep.subr.mxu0 0.0
        %1252 = vmatpush1.xpose.msra.mxu0 0.0
        %1253 = vmatprep.subr.mxu0 0.0
        %1254 = vmatpush1.xpose.msra.mxu0 0.0
        %1255 = vmatprep.subr.mxu0 0.0
        %1256 = vmatpush1.xpose.msra.mxu0 0.0
        %1257 = vmatprep.subr.mxu0 0.0
        %1258 = vmatpush1.xpose.msra.mxu0 0.0
        %1259 = vmatprep.subr.mxu0 0.0
        %1260 = vmatpush1.xpose.msra.mxu0 0.0
        %1261 = vmatprep.subr.mxu0 0.0
        %1262 = vmatpush1.xpose.msra.mxu0 0.0
        %1263 = vmatprep.subr.mxu0 0.0
        %1264 = vmatpush1.xpose.msra.mxu0 0.0
        %1265 = vmatprep.subr.mxu0 0.0
        %1266 = vmatpush1.xpose.msra.mxu0 0.0
        %1267 = vmatprep.subr.mxu0 0.0
        %1268 = vmatpush1.xpose.msra.mxu0 0.0
        %1269 = vmatprep.subr.mxu0 0.0
        %1270 = vmatpush1.xpose.msra.mxu0 0.0
        %1271 = vmatprep.subr.mxu0 0.0
        %1272 = vmatpush1.xpose.msra.mxu0 0.0
        %1273 = vmatprep.subr.mxu0 0.0
        %1274 = vmatpush1.xpose.msra.mxu0 0.0
        %1275 = vmatprep.subr.mxu0 0.0
        %1276 = vmatpush1.xpose.msra.mxu0 0.0
        %1277 = vmatprep.subr.mxu0 0.0
        %1278 = vmatpush1.xpose.msra.mxu0 0.0
        %1279 = vmatprep.subr.mxu0 0.0
        %1280 = vmatpush1.xpose.msra.mxu0 0.0
        %1281 = vmatprep.subr.mxu0 0.0
        %1282 = vmatpush1.xpose.msra.mxu0 0.0
        %1283 = vmatprep.subr.mxu0 0.0
        %1284 = vmatpush1.xpose.msra.mxu0 0.0
        %1285 = vmatprep.subr.mxu0 0.0
        %1286 = vmatpush1.xpose.msra.mxu0 0.0
        %1287 = vmatprep.mubr.f32.mxu0 0.0
        %1288 = vmatmul.mubr.f32.gmra.mrb[0].mxu0 %v1218
        %v1289 = vpop.f32.mrb[0].mxu0
        %v1290 = vadd.f32 0.0, %v1289
        %v1291 = vpop.f32.mrb[0].mxu0
        %1292 = vdwg.mxu0
        %v1293 = vsel %vm700, %v1290, -inf
        %1294 = vmax.xlane.f32.xlu0 %v1293
        %v1295 = vpop.xlane.xlu0 %1294
        %v1296 = vsub.f32 %v1290, %v1295
        %v1297 = vmul.f32 %v1296, 1.442695
        %v1298 = vpow.pop %v1297
        %v1299 = vsel %vm700, %v1298, 0.0
        %1300 = vadd.xlane.f32.xlu0 %v1299
        %v1301 = vpop.xlane.xlu0 %1300
        %v1302 = vrcp.pop %v1301
        %v1303 = vmul.f32 %v1298, %v1302
        %s1304 = scalar_lea.vmem %s269, 16 [#allocation7]
        %1305 = vst.msk [vmem:[%s1304] sm:$0xff] %vm700, %v1303
        %v1307 = vsel %vm700, %v1303, 0
        %1309 = vmatprep.subr.mxu0 0.0
        %1310 = vmatpush1.msra.mxu0 %v1216
        %1311 = vmatprep.subr.mxu0 0.0
        %1312 = vmatpush1.msra.mxu0 0.0
        %1313 = vmatprep.subr.mxu0 0.0
        %1314 = vmatpush1.msra.mxu0 0.0
        %1315 = vmatprep.subr.mxu0 0.0
        %1316 = vmatpush1.msra.mxu0 0.0
        %1317 = vmatprep.subr.mxu0 0.0
        %1318 = vmatpush1.msra.mxu0 0.0
        %1319 = vmatprep.subr.mxu0 0.0
        %1320 = vmatpush1.msra.mxu0 0.0
        %1321 = vmatprep.subr.mxu0 0.0
        %1322 = vmatpush1.msra.mxu0 0.0
        %1323 = vmatprep.subr.mxu0 0.0
        %1324 = vmatpush1.msra.mxu0 0.0
        %1325 = vmatprep.subr.mxu0 0.0
        %1326 = vmatpush1.msra.mxu0 0.0
        %1327 = vmatprep.subr.mxu0 0.0
        %1328 = vmatpush1.msra.mxu0 0.0
        %1329 = vmatprep.subr.mxu0 0.0
        %1330 = vmatpush1.msra.mxu0 0.0
        %1331 = vmatprep.subr.mxu0 0.0
        %1332 = vmatpush1.msra.mxu0 0.0
        %1333 = vmatprep.subr.mxu0 0.0
        %1334 = vmatpush1.msra.mxu0 0.0
        %1335 = vmatprep.subr.mxu0 0.0
        %1336 = vmatpush1.msra.mxu0 0.0
        %1337 = vmatprep.subr.mxu0 0.0
        %1338 = vmatpush1.msra.mxu0 0.0
        %1339 = vmatprep.subr.mxu0 0.0
        %1340 = vmatpush1.msra.mxu0 0.0
        %1341 = vmatprep.subr.mxu0 0.0
        %1342 = vmatpush1.msra.mxu0 0.0
        %1343 = vmatprep.subr.mxu0 0.0
        %1344 = vmatpush1.msra.mxu0 0.0
        %1345 = vmatprep.subr.mxu0 0.0
        %1346 = vmatpush1.msra.mxu0 0.0
        %1347 = vmatprep.subr.mxu0 0.0
        %1348 = vmatpush1.msra.mxu0 0.0
        %1349 = vmatprep.subr.mxu0 0.0
        %1350 = vmatpush1.msra.mxu0 0.0
        %1351 = vmatprep.subr.mxu0 0.0
        %1352 = vmatpush1.msra.mxu0 0.0
        %1353 = vmatprep.subr.mxu0 0.0
        %1354 = vmatpush1.msra.mxu0 0.0
        %1355 = vmatprep.subr.mxu0 0.0
        %1356 = vmatpush1.msra.mxu0 0.0
        %1357 = vmatprep.subr.mxu0 0.0
        %1358 = vmatpush1.msra.mxu0 0.0
        %1359 = vmatprep.subr.mxu0 0.0
        %1360 = vmatpush1.msra.mxu0 0.0
        %1361 = vmatprep.subr.mxu0 0.0
        %1362 = vmatpush1.msra.mxu0 0.0
        %1363 = vmatprep.subr.mxu0 0.0
        %1364 = vmatpush1.msra.mxu0 0.0
        %1365 = vmatprep.subr.mxu0 0.0
        %1366 = vmatpush1.msra.mxu0 0.0
        %1367 = vmatprep.subr.mxu0 0.0
        %1368 = vmatpush1.msra.mxu0 0.0
        %1369 = vmatprep.subr.mxu0 0.0
        %1370 = vmatpush1.msra.mxu0 0.0
        %1371 = vmatprep.subr.mxu0 0.0
        %1372 = vmatpush1.msra.mxu0 0.0
        %1373 = vmatprep.mubr.f32.mxu0 0.0
        %1374 = vmatmul.mubr.f32.gmra.mrb[0].mxu0 %v1307
        %v1375 = vpop.f32.mrb[0].mxu0
        %v1376 = vadd.f32 0.0, %v1375
        %v1377 = vpop.f32.mrb[0].mxu0
        %1378 = vdwg.mxu0
        %s1379 = scalar_lea.vmem %s3, 64
        %v1380 = vld [vmem:[%s1379] sm:$0xff]
        %v1381 = vld [vmem:[%s1379 + $0x8] sm:$0xff]
        %v1382 = vld [vmem:[%s1379 + $0x10] sm:$0xff]
        %v1383 = vld [vmem:[%s1379 + $0x18] sm:$0xff]
        %v1385 = vsel %vm700, %v1376, 0
        %v1388 = vsel %vm700, %v1380, 0
        %v1391 = vsel %vm700, %v1381, 0
        %v1394 = vsel %vm700, %v1382, 0
        %v1397 = vsel %vm700, %v1383, 0
        %1399 = vmatprep.subr.mxu0 0.0
        %1400 = vmatpush1.xpose.msra.mxu0 %v1388
        %1401 = vmatprep.subr.mxu0 0.0
        %1402 = vmatpush1.xpose.msra.mxu0 %v1391
        %1403 = vmatprep.subr.mxu0 0.0
        %1404 = vmatpush1.xpose.msra.mxu0 %v1394
        %1405 = vmatprep.subr.mxu0 0.0
        %1406 = vmatpush1.xpose.msra.mxu0 %v1397
        %1407 = vmatprep.subr.mxu0 0.0
        %1408 = vmatpush1.xpose.msra.mxu0 0.0
        %1409 = vmatprep.subr.mxu0 0.0
        %1410 = vmatpush1.xpose.msra.mxu0 0.0
        %1411 = vmatprep.subr.mxu0 0.0
        %1412 = vmatpush1.xpose.msra.mxu0 0.0
        %1413 = vmatprep.subr.mxu0 0.0
        %1414 = vmatpush1.xpose.msra.mxu0 0.0
        %1415 = vmatprep.subr.mxu0 0.0
        %1416 = vmatpush1.xpose.msra.mxu0 0.0
        %1417 = vmatprep.subr.mxu0 0.0
        %1418 = vmatpush1.xpose.msra.mxu0 0.0
        %1419 = vmatprep.subr.mxu0 0.0
        %1420 = vmatpush1.xpose.msra.mxu0 0.0
        %1421 = vmatprep.subr.mxu0 0.0
        %1422 = vmatpush1.xpose.msra.mxu0 0.0
        %1423 = vmatprep.subr.mxu0 0.0
        %1424 = vmatpush1.xpose.msra.mxu0 0.0
        %1425 = vmatprep.subr.mxu0 0.0
        %1426 = vmatpush1.xpose.msra.mxu0 0.0
        %1427 = vmatprep.subr.mxu0 0.0
        %1428 = vmatpush1.xpose.msra.mxu0 0.0
        %1429 = vmatprep.subr.mxu0 0.0
        %1430 = vmatpush1.xpose.msra.mxu0 0.0
        %1431 = vmatprep.subr.mxu0 0.0
        %1432 = vmatpush1.xpose.msra.mxu0 0.0
        %1433 = vmatprep.subr.mxu0 0.0
        %1434 = vmatpush1.xpose.msra.mxu0 0.0
        %1435 = vmatprep.subr.mxu0 0.0
        %1436 = vmatpush1.xpose.msra.mxu0 0.0
        %1437 = vmatprep.subr.mxu0 0.0
        %1438 = vmatpush1.xpose.msra.mxu0 0.0
        %1439 = vmatprep.subr.mxu0 0.0
        %1440 = vmatpush1.xpose.msra.mxu0 0.0
        %1441 = vmatprep.subr.mxu0 0.0
        %1442 = vmatpush1.xpose.msra.mxu0 0.0
        %1443 = vmatprep.subr.mxu0 0.0
        %1444 = vmatpush1.xpose.msra.mxu0 0.0
        %1445 = vmatprep.subr.mxu0 0.0
        %1446 = vmatpush1.xpose.msra.mxu0 0.0
        %1447 = vmatprep.subr.mxu0 0.0
        %1448 = vmatpush1.xpose.msra.mxu0 0.0
        %1449 = vmatprep.subr.mxu0 0.0
        %1450 = vmatpush1.xpose.msra.mxu0 0.0
        %1451 = vmatprep.subr.mxu0 0.0
        %1452 = vmatpush1.xpose.msra.mxu0 0.0
        %1453 = vmatprep.subr.mxu0 0.0
        %1454 = vmatpush1.xpose.msra.mxu0 0.0
        %1455 = vmatprep.subr.mxu0 0.0
        %1456 = vmatpush1.xpose.msra.mxu0 0.0
        %1457 = vmatprep.subr.mxu0 0.0
        %1458 = vmatpush1.xpose.msra.mxu0 0.0
        %1459 = vmatprep.subr.mxu0 0.0
        %1460 = vmatpush1.xpose.msra.mxu0 0.0
        %1461 = vmatprep.subr.mxu0 0.0
        %1462 = vmatpush1.xpose.msra.mxu0 0.0
        %1463 = vmatprep.mubr.f32.mxu0 0.0
        %1464 = vmatmul.mubr.f32.gmra.mrb[0].mxu0 %v1385
        %v1465 = vpop.f32.mrb[0].mxu0
        %v1466 = vadd.f32 0.0, %v1465
        %v1467 = vpop.f32.mrb[0].mxu0
        %1468 = vdwg.mxu0
        %v1469 = vadd.f32 %v1207, %v1466
        %s1470 = sadd.s32 %s695, 24
        %s1471 = scalar_lea.vmem [#allocation2], %s1470
        %v1472 = vld [vmem:[%s1471] sm:$0xff]
        %s1473 = scalar_lea.vmem [#allocation3], 24
        %v1474 = vld [vmem:[%s1473] sm:$0xff]
        %s1475 = scalar_lea.vmem [#allocation4], 24
        %v1476 = vld [vmem:[%s1475] sm:$0xff]
        %v1478 = vsel %vm700, %v1472, 0
        %v1481 = vsel %vm700, %v1474, 0
        %1483 = vmatprep.subr.mxu0 0.0
        %1484 = vmatpush1.xpose.msra.mxu0 %v1481
        %1485 = vmatprep.subr.mxu0 0.0
        %1486 = vmatpush1.xpose.msra.mxu0 0.0
        %1487 = vmatprep.subr.mxu0 0.0
        %1488 = vmatpush1.xpose.msra.mxu0 0.0
        %1489 = vmatprep.subr.mxu0 0.0
        %1490 = vmatpush1.xpose.msra.mxu0 0.0
        %1491 = vmatprep.subr.mxu0 0.0
        %1492 = vmatpush1.xpose.msra.mxu0 0.0
        %1493 = vmatprep.subr.mxu0 0.0
        %1494 = vmatpush1.xpose.msra.mxu0 0.0
        %1495 = vmatprep.subr.mxu0 0.0
        %1496 = vmatpush1.xpose.msra.mxu0 0.0
        %1497 = vmatprep.subr.mxu0 0.0
        %1498 = vmatpush1.xpose.msra.mxu0 0.0
        %1499 = vmatprep.subr.mxu0 0.0
        %1500 = vmatpush1.xpose.msra.mxu0 0.0
        %1501 = vmatprep.subr.mxu0 0.0
        %1502 = vmatpush1.xpose.msra.mxu0 0.0
        %1503 = vmatprep.subr.mxu0 0.0
        %1504 = vmatpush1.xpose.msra.mxu0 0.0
        %1505 = vmatprep.subr.mxu0 0.0
        %1506 = vmatpush1.xpose.msra.mxu0 0.0
        %1507 = vmatprep.subr.mxu0 0.0
        %1508 = vmatpush1.xpose.msra.mxu0 0.0
        %1509 = vmatprep.subr.mxu0 0.0
        %1510 = vmatpush1.xpose.msra.mxu0 0.0
        %1511 = vmatprep.subr.mxu0 0.0
        %1512 = vmatpush1.xpose.msra.mxu0 0.0
        %1513 = vmatprep.subr.mxu0 0.0
        %1514 = vmatpush1.xpose.msra.mxu0 0.0
        %1515 = vmatprep.subr.mxu0 0.0
        %1516 = vmatpush1.xpose.msra.mxu0 0.0
        %1517 = vmatprep.subr.mxu0 0.0
        %1518 = vmatpush1.xpose.msra.mxu0 0.0
        %1519 = vmatprep.subr.mxu0 0.0
        %1520 = vmatpush1.xpose.msra.mxu0 0.0
        %1521 = vmatprep.subr.mxu0 0.0
        %1522 = vmatpush1.xpose.msra.mxu0 0.0
        %1523 = vmatprep.subr.mxu0 0.0
        %1524 = vmatpush1.xpose.msra.mxu0 0.0
        %1525 = vmatprep.subr.mxu0 0.0
        %1526 = vmatpush1.xpose.msra.mxu0 0.0
        %1527 = vmatprep.subr.mxu0 0.0
        %1528 = vmatpush1.xpose.msra.mxu0 0.0
        %1529 = vmatprep.subr.mxu0 0.0
        %1530 = vmatpush1.xpose.msra.mxu0 0.0
        %1531 = vmatprep.subr.mxu0 0.0
        %1532 = vmatpush1.xpose.msra.mxu0 0.0
        %1533 = vmatprep.subr.mxu0 0.0
        %1534 = vmatpush1.xpose.msra.mxu0 0.0
        %1535 = vmatprep.subr.mxu0 0.0
        %1536 = vmatpush1.xpose.msra.mxu0 0.0
        %1537 = vmatprep.subr.mxu0 0.0
        %1538 = vmatpush1.xpose.msra.mxu0 0.0
        %1539 = vmatprep.subr.mxu0 0.0
        %1540 = vmatpush1.xpose.msra.mxu0 0.0
        %1541 = vmatprep.subr.mxu0 0.0
        %1542 = vmatpush1.xpose.msra.mxu0 0.0
        %1543 = vmatprep.subr.mxu0 0.0
        %1544 = vmatpush1.xpose.msra.mxu0 0.0
        %1545 = vmatprep.subr.mxu0 0.0
        %1546 = vmatpush1.xpose.msra.mxu0 0.0
        %1547 = vmatprep.mubr.f32.mxu0 0.0
        %1548 = vmatmul.mubr.f32.gmra.mrb[0].mxu0 %v1478
        %v1549 = vpop.f32.mrb[0].mxu0
        %v1550 = vadd.f32 0.0, %v1549
        %v1551 = vpop.f32.mrb[0].mxu0
        %1552 = vdwg.mxu0
        %v1553 = vsel %vm700, %v1550, -inf
        %1554 = vmax.xlane.f32.xlu0 %v1553
        %v1555 = vpop.xlane.xlu0 %1554
        %v1556 = vsub.f32 %v1550, %v1555
        %v1557 = vmul.f32 %v1556, 1.442695
        %v1558 = vpow.pop %v1557
        %v1559 = vsel %vm700, %v1558, 0.0
        %1560 = vadd.xlane.f32.xlu0 %v1559
        %v1561 = vpop.xlane.xlu0 %1560
        %v1562 = vrcp.pop %v1561
        %v1563 = vmul.f32 %v1558, %v1562
        %s1564 = scalar_lea.vmem %s269, 24 [#allocation7]
        %1565 = vst.msk [vmem:[%s1564] sm:$0xff] %vm700, %v1563
        %v1567 = vsel %vm700, %v1563, 0
        %1569 = vmatprep.subr.mxu0 0.0
        %1570 = vmatpush1.msra.mxu0 %v1476
        %1571 = vmatprep.subr.mxu0 0.0
        %1572 = vmatpush1.msra.mxu0 0.0
        %1573 = vmatprep.subr.mxu0 0.0
        %1574 = vmatpush1.msra.mxu0 0.0
        %1575 = vmatprep.subr.mxu0 0.0
        %1576 = vmatpush1.msra.mxu0 0.0
        %1577 = vmatprep.subr.mxu0 0.0
        %1578 = vmatpush1.msra.mxu0 0.0
        %1579 = vmatprep.subr.mxu0 0.0
        %1580 = vmatpush1.msra.mxu0 0.0
        %1581 = vmatprep.subr.mxu0 0.0
        %1582 = vmatpush1.msra.mxu0 0.0
        %1583 = vmatprep.subr.mxu0 0.0
        %1584 = vmatpush1.msra.mxu0 0.0
        %1585 = vmatprep.subr.mxu0 0.0
        %1586 = vmatpush1.msra.mxu0 0.0
        %1587 = vmatprep.subr.mxu0 0.0
        %1588 = vmatpush1.msra.mxu0 0.0
        %1589 = vmatprep.subr.mxu0 0.0
        %1590 = vmatpush1.msra.mxu0 0.0
        %1591 = vmatprep.subr.mxu0 0.0
        %1592 = vmatpush1.msra.mxu0 0.0
        %1593 = vmatprep.subr.mxu0 0.0
        %1594 = vmatpush1.msra.mxu0 0.0
        %1595 = vmatprep.subr.mxu0 0.0
        %1596 = vmatpush1.msra.mxu0 0.0
        %1597 = vmatprep.subr.mxu0 0.0
        %1598 = vmatpush1.msra.mxu0 0.0
        %1599 = vmatprep.subr.mxu0 0.0
        %1600 = vmatpush1.msra.mxu0 0.0
        %1601 = vmatprep.subr.mxu0 0.0
        %1602 = vmatpush1.msra.mxu0 0.0
        %1603 = vmatprep.subr.mxu0 0.0
        %1604 = vmatpush1.msra.mxu0 0.0
        %1605 = vmatprep.subr.mxu0 0.0
        %1606 = vmatpush1.msra.mxu0 0.0
        %1607 = vmatprep.subr.mxu0 0.0
        %1608 = vmatpush1.msra.mxu0 0.0
        %1609 = vmatprep.subr.mxu0 0.0
        %1610 = vmatpush1.msra.mxu0 0.0
        %1611 = vmatprep.subr.mxu0 0.0
        %1612 = vmatpush1.msra.mxu0 0.0
        %1613 = vmatprep.subr.mxu0 0.0
        %1614 = vmatpush1.msra.mxu0 0.0
        %1615 = vmatprep.subr.mxu0 0.0
        %1616 = vmatpush1.msra.mxu0 0.0
        %1617 = vmatprep.subr.mxu0 0.0
        %1618 = vmatpush1.msra.mxu0 0.0
        %1619 = vmatprep.subr.mxu0 0.0
        %1620 = vmatpush1.msra.mxu0 0.0
        %1621 = vmatprep.subr.mxu0 0.0
        %1622 = vmatpush1.msra.mxu0 0.0
        %1623 = vmatprep.subr.mxu0 0.0
        %1624 = vmatpush1.msra.mxu0 0.0
        %1625 = vmatprep.subr.mxu0 0.0
        %1626 = vmatpush1.msra.mxu0 0.0
        %1627 = vmatprep.subr.mxu0 0.0
        %1628 = vmatpush1.msra.mxu0 0.0
        %1629 = vmatprep.subr.mxu0 0.0
        %1630 = vmatpush1.msra.mxu0 0.0
        %1631 = vmatprep.subr.mxu0 0.0
        %1632 = vmatpush1.msra.mxu0 0.0
        %1633 = vmatprep.mubr.f32.mxu0 0.0
        %1634 = vmatmul.mubr.f32.gmra.mrb[0].mxu0 %v1567
        %v1635 = vpop.f32.mrb[0].mxu0
        %v1636 = vadd.f32 0.0, %v1635
        %v1637 = vpop.f32.mrb[0].mxu0
        %1638 = vdwg.mxu0
        %s1639 = scalar_lea.vmem %s3, 96
        %v1640 = vld [vmem:[%s1639] sm:$0xff]
        %v1641 = vld [vmem:[%s1639 + $0x8] sm:$0xff]
        %v1642 = vld [vmem:[%s1639 + $0x10] sm:$0xff]
        %v1643 = vld [vmem:[%s1639 + $0x18] sm:$0xff]
        %v1645 = vsel %vm700, %v1636, 0
        %v1648 = vsel %vm700, %v1640, 0
        %v1651 = vsel %vm700, %v1641, 0
        %v1654 = vsel %vm700, %v1642, 0
        %v1657 = vsel %vm700, %v1643, 0
        %1659 = vmatprep.subr.mxu0 0.0
        %1660 = vmatpush1.xpose.msra.mxu0 %v1648
        %1661 = vmatprep.subr.mxu0 0.0
        %1662 = vmatpush1.xpose.msra.mxu0 %v1651
        %1663 = vmatprep.subr.mxu0 0.0
        %1664 = vmatpush1.xpose.msra.mxu0 %v1654
        %1665 = vmatprep.subr.mxu0 0.0
        %1666 = vmatpush1.xpose.msra.mxu0 %v1657
        %1667 = vmatprep.subr.mxu0 0.0
        %1668 = vmatpush1.xpose.msra.mxu0 0.0
        %1669 = vmatprep.subr.mxu0 0.0
        %1670 = vmatpush1.xpose.msra.mxu0 0.0
        %1671 = vmatprep.subr.mxu0 0.0
        %1672 = vmatpush1.xpose.msra.mxu0 0.0
        %1673 = vmatprep.subr.mxu0 0.0
        %1674 = vmatpush1.xpose.msra.mxu0 0.0
        %1675 = vmatprep.subr.mxu0 0.0
        %1676 = vmatpush1.xpose.msra.mxu0 0.0
        %1677 = vmatprep.subr.mxu0 0.0
        %1678 = vmatpush1.xpose.msra.mxu0 0.0
        %1679 = vmatprep.subr.mxu0 0.0
        %1680 = vmatpush1.xpose.msra.mxu0 0.0
        %1681 = vmatprep.subr.mxu0 0.0
        %1682 = vmatpush1.xpose.msra.mxu0 0.0
        %1683 = vmatprep.subr.mxu0 0.0
        %1684 = vmatpush1.xpose.msra.mxu0 0.0
        %1685 = vmatprep.subr.mxu0 0.0
        %1686 = vmatpush1.xpose.msra.mxu0 0.0
        %1687 = vmatprep.subr.mxu0 0.0
        %1688 = vmatpush1.xpose.msra.mxu0 0.0
        %1689 = vmatprep.subr.mxu0 0.0
        %1690 = vmatpush1.xpose.msra.mxu0 0.0
        %1691 = vmatprep.subr.mxu0 0.0
        %1692 = vmatpush1.xpose.msra.mxu0 0.0
        %1693 = vmatprep.subr.mxu0 0.0
        %1694 = vmatpush1.xpose.msra.mxu0 0.0
        %1695 = vmatprep.subr.mxu0 0.0
        %1696 = vmatpush1.xpose.msra.mxu0 0.0
        %1697 = vmatprep.subr.mxu0 0.0
        %1698 = vmatpush1.xpose.msra.mxu0 0.0
        %1699 = vmatprep.subr.mxu0 0.0
        %1700 = vmatpush1.xpose.msra.mxu0 0.0
        %1701 = vmatprep.subr.mxu0 0.0
        %1702 = vmatpush1.xpose.msra.mxu0 0.0
        %1703 = vmatprep.subr.mxu0 0.0
        %1704 = vmatpush1.xpose.msra.mxu0 0.0
        %1705 = vmatprep.subr.mxu0 0.0
        %1706 = vmatpush1.xpose.msra.mxu0 0.0
        %1707 = vmatprep.subr.mxu0 0.0
        %1708 = vmatpush1.xpose.msra.mxu0 0.0
        %1709 = vmatprep.subr.mxu0 0.0
        %1710 = vmatpush1.xpose.msra.mxu0 0.0
        %1711 = vmatprep.subr.mxu0 0.0
        %1712 = vmatpush1.xpose.msra.mxu0 0.0
        %1713 = vmatprep.subr.mxu0 0.0
        %1714 = vmatpush1.xpose.msra.mxu0 0.0
        %1715 = vmatprep.subr.mxu0 0.0
        %1716 = vmatpush1.xpose.msra.mxu0 0.0
        %1717 = vmatprep.subr.mxu0 0.0
        %1718 = vmatpush1.xpose.msra.mxu0 0.0
        %1719 = vmatprep.subr.mxu0 0.0
        %1720 = vmatpush1.xpose.msra.mxu0 0.0
        %1721 = vmatprep.subr.mxu0 0.0
        %1722 = vmatpush1.xpose.msra.mxu0 0.0
        %1723 = vmatprep.mubr.f32.mxu0 0.0
        %1724 = vmatmul.mubr.f32.gmra.mrb[0].mxu0 %v1645
        %v1725 = vpop.f32.mrb[0].mxu0
        %v1726 = vadd.f32 0.0, %v1725
        %v1727 = vpop.f32.mrb[0].mxu0
        %1728 = vdwg.mxu0
        %v1729 = vadd.f32 %v1469, %v1726
        %v1730 = vld [vmem:[%s4] sm:$0x1]
        %v1732 = vlaneseq
        %v1733 = vshrl.u32 %v1732, 7
        %v1734 = vsub.s32 0, %v1733
        %v1735 = vrot.slane %v1730, %v1734
        %v1737 = vadd.f32 %v1729, %v1735
        %vm1738 = vcmask 261120
        %1739 = vst.msk [vmem:[%s262] sm:$0xff] %vm1738, %v1737
        %s1740 = sand.u32 %s156, 1
        %s1741 = scalar_lea.sflag [#allocation6], %s1740
        %s1742 = sand.u32 %s156, 1
        %s1743 = smul.addr %s1742, 8
        %s1744 = scalar_lea.vmem [#allocation5], %s1743
        %s1745 = sand.u32 %s184, 1
        %s1746 = scalar_lea.sflag [#allocation8], %s1745
        %s1747 = sand.u32 %s184, 1
        %s1748 = smul.addr %s1747, 32
        %s1749 = scalar_lea.vmem [#allocation7], %s1748
        // Predicated region
        $region45: #{tpu_custom_call.1} parent=39 // pred_check
          %p1750 = pneg %p166
        $region46: #{tpu_custom_call.1} parent=39 // pred_check_branch
          %1752 = sbr.rel (%p1750) target = $region48
        $region47: #{tpu_custom_call.1} parent=39 // pred_region
          %s1754 = ssub.s32 128, 128
          %1755 = vsyncadd %s1741, %s1754
          %s1756 = sadd.s32 %s29, %s28
          %s1757 = smul.addr %s1756, 128
          %s1758 = scalar_lea.hbm %s5, %s1757
          %s1760 = sshll.u32 %s1744, 4
          %s1761 = int_to_ptr.vmem [resolvable:$true] %s1760
          %1763 = dma.vmem_to_hbm [thread:$0]  %s1761, 128, %s1758, %s1741
        $region48: #{tpu_custom_call.1} parent=39 // pred_fallthru
          _
        // Predicated region
        $region49: #{tpu_custom_call.1} parent=39 // pred_check
          %p1764 = pneg %p194
        $region50: #{tpu_custom_call.1} parent=39 // pred_check_branch
          %1766 = sbr.rel (%p1764) target = $region52
        $region51: #{tpu_custom_call.1} parent=39 // pred_region
          %s1768 = ssub.s32 512, 512
          %1769 = vsyncadd %s1746, %s1768
          %s1770 = smul.addr %s28, 4
          %s1771 = sadd.s32 %s29, %s1770
          %s1772 = smul.addr %s1771, 128
          %s1773 = scalar_lea.hbm %s6, %s1772
          %s1774 = sshll.u32 %s1749, 4
          %s1775 = int_to_ptr.vmem [resolvable:$true] %s1774
          %1780 = dma.vmem_to_hbm [thread:$0]  %s1775, 512, %s1773, %s1746, 128, 128, 8
        $region52: #{tpu_custom_call.1} parent=39 // pred_fallthru
          _
      $region40: #{tpu_custom_call.1} parent=5 // pred_fallthru
        _
      %p1781 = scmp.le.s32.totalorder 2, %s19
      // Predicated region
      $region53: #{tpu_custom_call.1} parent=5 // pred_check
        %p1782 = pneg %p1781
      $region54: #{tpu_custom_call.1} parent=5 // pred_check_branch
        %1784 = sbr.rel (%p1782) target = $region56
      $region55: #{tpu_custom_call.1} parent=5 // pred_region
        %s1785 = ssub.s32 %s19, 2
        // Predicated region
        $region57: #{tpu_custom_call.1} parent=55 // pred_check
          %p1786 = pneg %p172
        $region58: #{tpu_custom_call.1} parent=55 // pred_check_branch
          %1788 = sbr.rel (%p1786) target = $region60
        $region59: #{tpu_custom_call.1} parent=55 // pred_region
          %s1789 = sand.u32 %s157, 1
          %s1790 = scalar_lea.sflag [#allocation6], %s1789
          %s1791 = sand.u32 %s157, 1
          %s1792 = smul.addr %s1791, 8
          %s1793 = scalar_lea.vmem [#allocation5], %s1792
          %1794 = dma.done %s1790, 128
        $region60: #{tpu_custom_call.1} parent=55 // pred_fallthru
          _
        // Predicated region
        $region61: #{tpu_custom_call.1} parent=55 // pred_check
          %p1795 = pneg %p200
        $region62: #{tpu_custom_call.1} parent=55 // pred_check_branch
          %1797 = sbr.rel (%p1795) target = $region64
        $region63: #{tpu_custom_call.1} parent=55 // pred_region
          %s1798 = sand.u32 %s185, 1
          %s1799 = scalar_lea.sflag [#allocation8], %s1798
          %s1800 = sand.u32 %s185, 1
          %s1801 = smul.addr %s1800, 32
          %s1802 = scalar_lea.vmem [#allocation7], %s1801
          %1803 = dma.done %s1799, 512
        $region64: #{tpu_custom_call.1} parent=55 // pred_fallthru
          _
      $region56: #{tpu_custom_call.1} parent=5 // pred_fallthru
        _
    $region6: #{tpu_custom_call.1} parent=1 // loop_footer
      %s23 = sadd.s32 1, %s19
    $region7: #{tpu_custom_call.1} parent=1 // loop_footer_branch
      %18 = sbr.rel target = $region3
    $region8: #{tpu_custom_call.1} parent=1 // loop_exit
      _
    %1804 = vsyncpa [#allocation6], 1
    %s1805 = scalar_lea.sflag [#allocation6], 1
    %1806 = vsyncpa %s1805, 1
    %1807 = vsyncpa [#allocation8], 1
    %s1808 = scalar_lea.sflag [#allocation8], 1
    %1809 = vsyncpa %s1808, 1

</llo_original>
